<compile_context>
chip_gen: v5e
topology: v5e:2x2
jax: 0.10.0
libtpu: 0.0.40
codegen_flags: <defaults>
</compile_context>

<pallas_src>
import functools

import jax
import jax.numpy as jnp
from jax.experimental import pallas as pl
from jax.experimental.pallas import tpu as pltpu


def _round_up(n, m):
    return (n + m - 1) // m * m


# -----------------------------------------------------------------------------
# Glue: transposed im2col for Conv2d(n_c, n_df, k=6, s=2, p=2), emitted in the
# caller's dtype (bf16) so the inflated patches array is never written as f32.
# -----------------------------------------------------------------------------
def im2col_T(x, k, stride, pad, k_pad):
    """x: (B, C, H, W) -> (k_pad, B*Ho*Wo).

    Rows ordered (c, kh, kw) to match PyTorch Conv2d weight.reshape(out, C*k*k),
    zero-padded from C*k*k up to k_pad; columns ordered (b, ho, wo)."""
    B, C, H, W = x.shape
    xp = jnp.pad(x, ((0, 0), (0, 0), (pad, pad), (pad, pad)))
    Ho = (H + 2 * pad - k) // stride + 1
    Wo = (W + 2 * pad - k) // stride + 1
    cols = []
    for kh in range(k):
        for kw in range(k):
            cols.append(
                xp[:, :, kh:kh + stride * Ho:stride, kw:kw + stride * Wo:stride]
            )
    p = jnp.stack(cols, axis=0).reshape(k, k, B, C, Ho, Wo)
    p = p.transpose(3, 0, 1, 2, 4, 5)                 # (C, kh, kw, B, Ho, Wo)
    p = p.reshape(C * k * k, B * Ho * Wo)             # (C*k*k, T)
    if k_pad > C * k * k:
        p = jnp.pad(p, ((0, k_pad - C * k * k), (0, 0)))
    return p, Ho, Wo


# -----------------------------------------------------------------------------
# Pallas kernel
# -----------------------------------------------------------------------------
def _leaky_relu(x, slope=0.2):
    return jnp.where(x >= 0, x, slope * x)


def disc_kernel(patches_ref, wpe_ref, bpe_ref,
                w1_ref, g1_ref, bt1_ref,
                w2_ref, g2_ref, bt2_ref,
                w3_ref, g3_ref, bt3_ref,
                w4_ref, out_ref, sbuf_ref, *, batch, tokens_per_batch):
    T = batch * tokens_per_batch
    inv_t = 1.0 / T

    # Patch embedding: (n_df, Kpad) @ (Kpad, T) on the MXU (bf16 in, f32 acc).
    x = jnp.dot(wpe_ref[...], patches_ref[...],
                preferred_element_type=jnp.float32) + bpe_ref[...]
    x = _leaky_relu(x).astype(jnp.bfloat16)           # bf16 at the MXU boundary

    def conv_bn_lrelu(x_bf16, w_ref, g_ref, bt_ref, cast_out=True):
        # 1x1 conv == per-token GEMM over channels (no bias: BN makes it a no-op).
        y = jnp.dot(w_ref[...], x_bf16, preferred_element_type=jnp.float32)
        # BatchNorm2d, training mode, biased variance, centered two-pass stats,
        # affine folded into per-channel scale (shift is just the BN bias).
        mean = jnp.sum(y, axis=1, keepdims=True) * inv_t          # (n_df, 1)
        d = y - mean
        var = jnp.sum(d * d, axis=1, keepdims=True) * inv_t       # (n_df, 1)
        scale = jax.lax.rsqrt(var + 1e-5) * g_ref[...]            # (n_df, 1)
        out = _leaky_relu(d * scale + bt_ref[...])
        return out.astype(jnp.bfloat16) if cast_out else out

    x = conv_bn_lrelu(x, w1_ref, g1_ref, bt1_ref)
    x = conv_bn_lrelu(x, w2_ref, g2_ref, bt2_ref)
    x = conv_bn_lrelu(x, w3_ref, g3_ref, bt3_ref, cast_out=False)  # stays f32 (feeds VPU only)

    # Final 1x1 conv to 1 channel (no bias): VPU multiply + sublane reduce.
    s = jnp.sum(x * w4_ref[...], axis=0, keepdims=True)           # (1, T) f32

    # Per-batch token sums: re-stage the (1, T) row as (B, P) in VMEM scratch
    # (cheap lane-aligned slice stores), then ONE vectorized lane reduction and
    # ONE output store -- no per-batch serial reduce/store tail.
    for b in range(batch):
        lo = b * tokens_per_batch
        sbuf_ref[pl.ds(b, 1), :] = s[:, lo:lo + tokens_per_batch]
    per_b = jnp.sum(sbuf_ref[...], axis=1, keepdims=True)          # (B, 1)
    out_ref[...] = jax.nn.sigmoid(per_b)


# -----------------------------------------------------------------------------
# Parameters (PyTorch init: Conv N(0,0.02)/zero bias, BN weight N(1,0.02)/zero bias)
# Conv biases of the 1x1 convs are omitted: zero-init AND absorbed by BN anyway.
# -----------------------------------------------------------------------------
def make_params(key, n_c, n_df, k, k_pad):
    ks = jax.random.split(key, 8)
    std = 0.02
    p = {}
    # Conv2d(n_c, n_df, k): weight (n_df, n_c*k*k), stored padded + bf16.
    wpe = jax.random.normal(ks[0], (n_df, n_c * k * k), jnp.float32) * std
    p["wpe"] = jnp.pad(wpe, ((0, 0), (0, k_pad - n_c * k * k))).astype(jnp.bfloat16)
    p["bpe"] = jnp.zeros((n_df, 1), jnp.float32)
    for i in range(1, 4):
        # Conv2d(n_df, n_df, 1): weight (out, in), bf16 for the MXU.
        p[f"w{i}"] = (jax.random.normal(ks[i], (n_df, n_df)) * std).astype(jnp.bfloat16)
        p[f"g{i}"] = (1.0 + jax.random.normal(ks[i + 3], (n_df, 1)) * std
                      ).astype(jnp.float32)
        p[f"bt{i}"] = jnp.zeros((n_df, 1), jnp.float32)
    # Conv2d(n_df, 1, 1, bias=False): weight used on the VPU, keep f32.
    p["w4"] = (jax.random.normal(ks[7], (n_df, 1)) * std).astype(jnp.float32)
    return p


# -----------------------------------------------------------------------------
# Wrapper
# -----------------------------------------------------------------------------
def _vmem_limit_bytes(k_pad, n_df, T, batch, tokens_per_batch):
    """Scoped-VMEM budget sized from the actual shapes, capped under physical."""
    param_bytes = n_df * k_pad * 2 + 3 * n_df * n_df * 2 + 10 * n_df * 4
    act_bytes = 16 * n_df * T                    # a few live f32/bf16 (n_df, T) temporaries
    need = (k_pad * T * 2 + param_bytes + act_bytes
            + batch * tokens_per_batch * 4 + (4 << 20))
    try:
        cap = int(pltpu.get_tpu_info().vmem_capacity_bytes)   # 128 MiB v5e/v6e, 64 MiB v7x
    except Exception:
        cap = 64 << 20
    return int(min(max(need, 16 << 20), max(cap - (16 << 20), 32 << 20)))


@functools.partial(jax.jit, static_argnames=("patch_size", "patch_stride", "patch_padding"))
def discriminator_forward(x, params, patch_size=6, patch_stride=2, patch_padding=2):
    B, C = x.shape[0], x.shape[1]
    n_df = params["wpe"].shape[0]
    k_pad = _round_up(C * patch_size * patch_size, 128)
    # Cast BEFORE im2col: the ~k^2/stride^2-inflated patches array is built and
    # written directly in bf16, halving the dominant HBM traffic into the kernel.
    patches, Ho, Wo = im2col_T(x.astype(jnp.bfloat16),
                               patch_size, patch_stride, patch_padding, k_pad)
    P = Ho * Wo
    T = B * P

    args = (patches, params["wpe"], params["bpe"],
            params["w1"], params["g1"], params["bt1"],
            params["w2"], params["g2"], params["bt2"],
            params["w3"], params["g3"], params["bt3"],
            params["w4"])

    flops = 2 * T * (n_df * k_pad + 3 * n_df * n_df) + 32 * n_df * T
    bytes_accessed = (k_pad * T * 2 + n_df * k_pad * 2
                      + 3 * n_df * n_df * 2 + 10 * n_df * 4 + B * 4)
    cost = pl.CostEstimate(flops=flops, transcendentals=3 * n_df + B,
                           bytes_accessed=bytes_accessed)

    kernel = functools.partial(disc_kernel, batch=B, tokens_per_batch=P)
    out = pl.pallas_call(
        kernel,
        out_shape=jax.ShapeDtypeStruct((B, 1), jnp.float32),
        # Whole (small) arrays resident in VMEM; budget derived from shapes.
        in_specs=[pl.BlockSpec(memory_space=pltpu.MemorySpace.VMEM)] * len(args),
        out_specs=pl.BlockSpec(memory_space=pltpu.MemorySpace.VMEM),
        scratch_shapes=[pltpu.VMEM((B, P), jnp.float32)],
        compiler_params=pltpu.CompilerParams(
            vmem_limit_bytes=_vmem_limit_bytes(k_pad, n_df, T, B, P)),
        cost_estimate=cost,
    )(*args)
    return out


# -----------------------------------------------------------------------------
# Pure-JAX reference (same math, no Pallas) for correctness check
# -----------------------------------------------------------------------------
def reference_forward(x, params, patch_size=6, patch_stride=2, patch_padding=2):
    B, C = x.shape[0], x.shape[1]
    k_pad = _round_up(C * patch_size * patch_size, 128)
    patches, Ho, Wo = im2col_T(x.astype(jnp.bfloat16),
                               patch_size, patch_stride, patch_padding, k_pad)
    P = Ho * Wo
    h = jnp.dot(params["wpe"], patches,
                preferred_element_type=jnp.float32) + params["bpe"]
    h = jnp.where(h >= 0, h, 0.2 * h).astype(jnp.bfloat16)
    for i in range(1, 4):
        y = jnp.dot(params[f"w{i}"], h, preferred_element_type=jnp.float32)
        m = jnp.mean(y, axis=1, keepdims=True)
        d = y - m
        v = jnp.mean(d * d, axis=1, keepdims=True)
        scale = jax.lax.rsqrt(v + 1e-5) * params[f"g{i}"]
        o = d * scale + params[f"bt{i}"]
        o = jnp.where(o >= 0, o, 0.2 * o)
        h = o.astype(jnp.bfloat16) if i < 3 else o
    s = jnp.sum(h * params["w4"], axis=0)              # (T,)
    s = s.reshape(B, P).sum(axis=1, keepdims=True)     # (B, 1)
    return jax.nn.sigmoid(s)


if __name__ == "__main__":
    # Small shapes consistent with the module: B=2, n_c=3, img=32 (module default),
    # n_df=32 (scaled down from 192), k=6, s=2, p=2  ->  Ho=Wo=16, P=256, T=512.
    B, n_c, img_size, n_df, k = 2, 3, 32, 32, 6
    key = jax.random.PRNGKey(0)
    kx, kp = jax.random.split(key)
    x = jax.random.normal(kx, (B, n_c, img_size, img_size), dtype=jnp.float32)
    k_pad = _round_up(n_c * k * k, 128)
    params = make_params(kp, n_c, n_df, k, k_pad)

    out = discriminator_forward(x, params)
    out = jax.block_until_ready(out)

    ref = reference_forward(x, params)
    assert out.shape == (B, 1), out.shape
    assert jnp.allclose(out, ref, atol=2e-3, rtol=2e-3), (out, ref)
    print("KERNEL_OK")
</pallas_src>

<mosaic_0001>
module attributes {stable_mosaic.version = 11 : i64} {
  func.func @disc_kernel(%arg0: memref<128x512xbf16, #tpu.memory_space<vmem>>, %arg1: memref<32x128xbf16, #tpu.memory_space<vmem>>, %arg2: memref<32x1xf32, #tpu.memory_space<vmem>>, %arg3: memref<32x32xbf16, #tpu.memory_space<vmem>>, %arg4: memref<32x1xf32, #tpu.memory_space<vmem>>, %arg5: memref<32x1xf32, #tpu.memory_space<vmem>>, %arg6: memref<32x32xbf16, #tpu.memory_space<vmem>>, %arg7: memref<32x1xf32, #tpu.memory_space<vmem>>, %arg8: memref<32x1xf32, #tpu.memory_space<vmem>>, %arg9: memref<32x32xbf16, #tpu.memory_space<vmem>>, %arg10: memref<32x1xf32, #tpu.memory_space<vmem>>, %arg11: memref<32x1xf32, #tpu.memory_space<vmem>>, %arg12: memref<32x1xf32, #tpu.memory_space<vmem>>, %arg13: memref<2x1xf32, #tpu.memory_space<vmem>>, %arg14: memref<2x256xf32, #tpu.memory_space<vmem>>) attributes {dimension_semantics = [], scalar_prefetch = 0 : i64, scratch_operands = 1 : i64, tpu.core_type = #tpu.core_type<tc>} {
    %c0 = arith.constant 0 : index
    %c0_0 = arith.constant 0 : index
    %0 = vector.load %arg1[%c0, %c0_0] : memref<32x128xbf16, #tpu.memory_space<vmem>>, vector<32x128xbf16>
    %c0_1 = arith.constant 0 : index
    %c0_2 = arith.constant 0 : index
    %1 = vector.load %arg0[%c0_1, %c0_2] : memref<128x512xbf16, #tpu.memory_space<vmem>>, vector<128x512xbf16>
    %cst = arith.constant dense<0.000000e+00> : vector<32x512xf32>
    %2 = tpu.matmul %0, %1, %cst {dimension_numbers = #tpu.dot_dimension_numbers<[1], [0], [0], [1], [0, 0, 1, 1], [], []>} : vector<32x128xbf16>, vector<128x512xbf16>, vector<32x512xf32> -> vector<32x512xf32>
    %c0_3 = arith.constant 0 : index
    %c0_4 = arith.constant 0 : index
    %3 = vector.load %arg2[%c0_3, %c0_4] : memref<32x1xf32, #tpu.memory_space<vmem>>, vector<32x1xf32>
    %4 = vector.broadcast %3 : vector<32x1xf32> to vector<32x512xf32>
    %5 = arith.addf %2, %4 : vector<32x512xf32>
    %cst_5 = arith.constant 0.000000e+00 : f32
    %6 = vector.broadcast %cst_5 : f32 to vector<32x512xf32>
    %7 = arith.cmpf oge, %5, %6 : vector<32x512xf32>
    %cst_6 = arith.constant 2.000000e-01 : f32
    %8 = vector.broadcast %cst_6 : f32 to vector<32x512xf32>
    %9 = arith.mulf %8, %5 : vector<32x512xf32>
    %10 = arith.select %7, %5, %9 : vector<32x512xi1>, vector<32x512xf32>
    %11 = arith.truncf %10 : vector<32x512xf32> to vector<32x512xbf16>
    %c0_7 = arith.constant 0 : index
    %c0_8 = arith.constant 0 : index
    %12 = vector.load %arg3[%c0_7, %c0_8] : memref<32x32xbf16, #tpu.memory_space<vmem>>, vector<32x32xbf16>
    %cst_9 = arith.constant dense<0.000000e+00> : vector<32x512xf32>
    %13 = tpu.matmul %12, %11, %cst_9 {dimension_numbers = #tpu.dot_dimension_numbers<[1], [0], [0], [1], [0, 0, 1, 1], [], []>} : vector<32x32xbf16>, vector<32x512xbf16>, vector<32x512xf32> -> vector<32x512xf32>
    %cst_10 = arith.constant dense<0.000000e+00> : vector<32xf32>
    %14 = vector.multi_reduction <add>, %13, %cst_10 [1] : vector<32x512xf32> to vector<32xf32>
    %15 = vector.shape_cast %14 : vector<32xf32> to vector<32x1xf32>
    %cst_11 = arith.constant 0.001953125 : f32
    %16 = vector.broadcast %cst_11 : f32 to vector<32x1xf32>
    %17 = arith.mulf %15, %16 : vector<32x1xf32>
    %18 = vector.broadcast %17 : vector<32x1xf32> to vector<32x512xf32>
    %19 = arith.subf %13, %18 : vector<32x512xf32>
    %20 = arith.mulf %19, %19 : vector<32x512xf32>
    %cst_12 = arith.constant dense<0.000000e+00> : vector<32xf32>
    %21 = vector.multi_reduction <add>, %20, %cst_12 [1] : vector<32x512xf32> to vector<32xf32>
    %22 = vector.shape_cast %21 : vector<32xf32> to vector<32x1xf32>
    %cst_13 = arith.constant 0.001953125 : f32
    %23 = vector.broadcast %cst_13 : f32 to vector<32x1xf32>
    %24 = arith.mulf %22, %23 : vector<32x1xf32>
    %cst_14 = arith.constant 9.99999974E-6 : f32
    %25 = vector.broadcast %cst_14 : f32 to vector<32x1xf32>
    %26 = arith.addf %24, %25 : vector<32x1xf32>
    %27 = math.rsqrt %26 : vector<32x1xf32>
    %c0_15 = arith.constant 0 : index
    %c0_16 = arith.constant 0 : index
    %28 = vector.load %arg4[%c0_15, %c0_16] : memref<32x1xf32, #tpu.memory_space<vmem>>, vector<32x1xf32>
    %29 = arith.mulf %27, %28 : vector<32x1xf32>
    %30 = vector.broadcast %29 : vector<32x1xf32> to vector<32x512xf32>
    %31 = arith.mulf %19, %30 : vector<32x512xf32>
    %c0_17 = arith.constant 0 : index
    %c0_18 = arith.constant 0 : index
    %32 = vector.load %arg5[%c0_17, %c0_18] : memref<32x1xf32, #tpu.memory_space<vmem>>, vector<32x1xf32>
    %33 = vector.broadcast %32 : vector<32x1xf32> to vector<32x512xf32>
    %34 = arith.addf %31, %33 : vector<32x512xf32>
    %cst_19 = arith.constant 0.000000e+00 : f32
    %35 = vector.broadcast %cst_19 : f32 to vector<32x512xf32>
    %36 = arith.cmpf oge, %34, %35 : vector<32x512xf32>
    %cst_20 = arith.constant 2.000000e-01 : f32
    %37 = vector.broadcast %cst_20 : f32 to vector<32x512xf32>
    %38 = arith.mulf %37, %34 : vector<32x512xf32>
    %39 = arith.select %36, %34, %38 : vector<32x512xi1>, vector<32x512xf32>
    %40 = arith.truncf %39 : vector<32x512xf32> to vector<32x512xbf16>
    %c0_21 = arith.constant 0 : index
    %c0_22 = arith.constant 0 : index
    %41 = vector.load %arg6[%c0_21, %c0_22] : memref<32x32xbf16, #tpu.memory_space<vmem>>, vector<32x32xbf16>
    %cst_23 = arith.constant dense<0.000000e+00> : vector<32x512xf32>
    %42 = tpu.matmul %41, %40, %cst_23 {dimension_numbers = #tpu.dot_dimension_numbers<[1], [0], [0], [1], [0, 0, 1, 1], [], []>} : vector<32x32xbf16>, vector<32x512xbf16>, vector<32x512xf32> -> vector<32x512xf32>
    %cst_24 = arith.constant dense<0.000000e+00> : vector<32xf32>
    %43 = vector.multi_reduction <add>, %42, %cst_24 [1] : vector<32x512xf32> to vector<32xf32>
    %44 = vector.shape_cast %43 : vector<32xf32> to vector<32x1xf32>
    %cst_25 = arith.constant 0.001953125 : f32
    %45 = vector.broadcast %cst_25 : f32 to vector<32x1xf32>
    %46 = arith.mulf %44, %45 : vector<32x1xf32>
    %47 = vector.broadcast %46 : vector<32x1xf32> to vector<32x512xf32>
    %48 = arith.subf %42, %47 : vector<32x512xf32>
    %49 = arith.mulf %48, %48 : vector<32x512xf32>
    %cst_26 = arith.constant dense<0.000000e+00> : vector<32xf32>
    %50 = vector.multi_reduction <add>, %49, %cst_26 [1] : vector<32x512xf32> to vector<32xf32>
    %51 = vector.shape_cast %50 : vector<32xf32> to vector<32x1xf32>
    %cst_27 = arith.constant 0.001953125 : f32
    %52 = vector.broadcast %cst_27 : f32 to vector<32x1xf32>
    %53 = arith.mulf %51, %52 : vector<32x1xf32>
    %cst_28 = arith.constant 9.99999974E-6 : f32
    %54 = vector.broadcast %cst_28 : f32 to vector<32x1xf32>
    %55 = arith.addf %53, %54 : vector<32x1xf32>
    %56 = math.rsqrt %55 : vector<32x1xf32>
    %c0_29 = arith.constant 0 : index
    %c0_30 = arith.constant 0 : index
    %57 = vector.load %arg7[%c0_29, %c0_30] : memref<32x1xf32, #tpu.memory_space<vmem>>, vector<32x1xf32>
    %58 = arith.mulf %56, %57 : vector<32x1xf32>
    %59 = vector.broadcast %58 : vector<32x1xf32> to vector<32x512xf32>
    %60 = arith.mulf %48, %59 : vector<32x512xf32>
    %c0_31 = arith.constant 0 : index
    %c0_32 = arith.constant 0 : index
    %61 = vector.load %arg8[%c0_31, %c0_32] : memref<32x1xf32, #tpu.memory_space<vmem>>, vector<32x1xf32>
    %62 = vector.broadcast %61 : vector<32x1xf32> to vector<32x512xf32>
    %63 = arith.addf %60, %62 : vector<32x512xf32>
    %cst_33 = arith.constant 0.000000e+00 : f32
    %64 = vector.broadcast %cst_33 : f32 to vector<32x512xf32>
    %65 = arith.cmpf oge, %63, %64 : vector<32x512xf32>
    %cst_34 = arith.constant 2.000000e-01 : f32
    %66 = vector.broadcast %cst_34 : f32 to vector<32x512xf32>
    %67 = arith.mulf %66, %63 : vector<32x512xf32>
    %68 = arith.select %65, %63, %67 : vector<32x512xi1>, vector<32x512xf32>
    %69 = arith.truncf %68 : vector<32x512xf32> to vector<32x512xbf16>
    %c0_35 = arith.constant 0 : index
    %c0_36 = arith.constant 0 : index
    %70 = vector.load %arg9[%c0_35, %c0_36] : memref<32x32xbf16, #tpu.memory_space<vmem>>, vector<32x32xbf16>
    %cst_37 = arith.constant dense<0.000000e+00> : vector<32x512xf32>
    %71 = tpu.matmul %70, %69, %cst_37 {dimension_numbers = #tpu.dot_dimension_numbers<[1], [0], [0], [1], [0, 0, 1, 1], [], []>} : vector<32x32xbf16>, vector<32x512xbf16>, vector<32x512xf32> -> vector<32x512xf32>
    %cst_38 = arith.constant dense<0.000000e+00> : vector<32xf32>
    %72 = vector.multi_reduction <add>, %71, %cst_38 [1] : vector<32x512xf32> to vector<32xf32>
    %73 = vector.shape_cast %72 : vector<32xf32> to vector<32x1xf32>
    %cst_39 = arith.constant 0.001953125 : f32
    %74 = vector.broadcast %cst_39 : f32 to vector<32x1xf32>
    %75 = arith.mulf %73, %74 : vector<32x1xf32>
    %76 = vector.broadcast %75 : vector<32x1xf32> to vector<32x512xf32>
    %77 = arith.subf %71, %76 : vector<32x512xf32>
    %78 = arith.mulf %77, %77 : vector<32x512xf32>
    %cst_40 = arith.constant dense<0.000000e+00> : vector<32xf32>
    %79 = vector.multi_reduction <add>, %78, %cst_40 [1] : vector<32x512xf32> to vector<32xf32>
    %80 = vector.shape_cast %79 : vector<32xf32> to vector<32x1xf32>
    %cst_41 = arith.constant 0.001953125 : f32
    %81 = vector.broadcast %cst_41 : f32 to vector<32x1xf32>
    %82 = arith.mulf %80, %81 : vector<32x1xf32>
    %cst_42 = arith.constant 9.99999974E-6 : f32
    %83 = vector.broadcast %cst_42 : f32 to vector<32x1xf32>
    %84 = arith.addf %82, %83 : vector<32x1xf32>
    %85 = math.rsqrt %84 : vector<32x1xf32>
    %c0_43 = arith.constant 0 : index
    %c0_44 = arith.constant 0 : index
    %86 = vector.load %arg10[%c0_43, %c0_44] : memref<32x1xf32, #tpu.memory_space<vmem>>, vector<32x1xf32>
    %87 = arith.mulf %85, %86 : vector<32x1xf32>
    %88 = vector.broadcast %87 : vector<32x1xf32> to vector<32x512xf32>
    %89 = arith.mulf %77, %88 : vector<32x512xf32>
    %c0_45 = arith.constant 0 : index
    %c0_46 = arith.constant 0 : index
    %90 = vector.load %arg11[%c0_45, %c0_46] : memref<32x1xf32, #tpu.memory_space<vmem>>, vector<32x1xf32>
    %91 = vector.broadcast %90 : vector<32x1xf32> to vector<32x512xf32>
    %92 = arith.addf %89, %91 : vector<32x512xf32>
    %cst_47 = arith.constant 0.000000e+00 : f32
    %93 = vector.broadcast %cst_47 : f32 to vector<32x512xf32>
    %94 = arith.cmpf oge, %92, %93 : vector<32x512xf32>
    %cst_48 = arith.constant 2.000000e-01 : f32
    %95 = vector.broadcast %cst_48 : f32 to vector<32x512xf32>
    %96 = arith.mulf %95, %92 : vector<32x512xf32>
    %97 = arith.select %94, %92, %96 : vector<32x512xi1>, vector<32x512xf32>
    %c0_49 = arith.constant 0 : index
    %c0_50 = arith.constant 0 : index
    %98 = vector.load %arg12[%c0_49, %c0_50] : memref<32x1xf32, #tpu.memory_space<vmem>>, vector<32x1xf32>
    %99 = vector.broadcast %98 : vector<32x1xf32> to vector<32x512xf32>
    %100 = arith.mulf %97, %99 : vector<32x512xf32>
    %cst_51 = arith.constant dense<0.000000e+00> : vector<512xf32>
    %101 = vector.multi_reduction <add>, %100, %cst_51 [0] : vector<32x512xf32> to vector<512xf32>
    %102 = vector.shape_cast %101 : vector<512xf32> to vector<1x512xf32>
    %103 = vector.extract_strided_slice %102 {offsets = [0, 0], sizes = [1, 256], strides = [1, 1]} : vector<1x512xf32> to vector<1x256xf32>
    %c0_52 = arith.constant 0 : index
    %c0_53 = arith.constant 0 : index
    %104 = vector.load %arg14[%c0_52, %c0_53] : memref<2x256xf32, #tpu.memory_space<vmem>>, vector<1x256xf32>
    tpu.vector_store %arg14[%c0_52, %c0_53], %103 {strides = array<i32>} : memref<2x256xf32, #tpu.memory_space<vmem>>, vector<1x256xf32>,
    %105 = vector.extract_strided_slice %102 {offsets = [0, 256], sizes = [1, 256], strides = [1, 1]} : vector<1x512xf32> to vector<1x256xf32>
    %c1 = arith.constant 1 : index
    %c0_54 = arith.constant 0 : index
    %106 = vector.load %arg14[%c1, %c0_54] : memref<2x256xf32, #tpu.memory_space<vmem>>, vector<1x256xf32>
    tpu.vector_store %arg14[%c1, %c0_54], %105 {strides = array<i32>} : memref<2x256xf32, #tpu.memory_space<vmem>>, vector<1x256xf32>,
    %c0_55 = arith.constant 0 : index
    %c0_56 = arith.constant 0 : index
    %107 = vector.load %arg14[%c0_55, %c0_56] : memref<2x256xf32, #tpu.memory_space<vmem>>, vector<2x256xf32>
    %cst_57 = arith.constant dense<0.000000e+00> : vector<2xf32>
    %108 = vector.multi_reduction <add>, %107, %cst_57 [1] : vector<2x256xf32> to vector<2xf32>
    %109 = vector.shape_cast %108 : vector<2xf32> to vector<2x1xf32>
    %110 = arith.negf %109 : vector<2x1xf32>
    %111 = math.exp %110 : vector<2x1xf32>
    %cst_58 = arith.constant 1.000000e+00 : f32
    %112 = vector.broadcast %cst_58 : f32 to vector<2x1xf32>
    %113 = arith.addf %112, %111 : vector<2x1xf32>
    %114 = arith.divf %112, %113 : vector<2x1xf32>
    %c0_59 = arith.constant 0 : index
    %c0_60 = arith.constant 0 : index
    %115 = vector.load %arg13[%c0_59, %c0_60] : memref<2x1xf32, #tpu.memory_space<vmem>>, vector<2x1xf32>
    tpu.vector_store %arg13[%c0_59, %c0_60], %114 {strides = array<i32>} : memref<2x1xf32, #tpu.memory_space<vmem>>, vector<2x1xf32>,
    return
  }
}

</mosaic_0001>

<llo_original>
// kernel: discriminator_forward.1
$region0: #{discriminator_forward.1}
  #allocation0 [shape = 'u32[]', space=smem, size = 0x4, offset = 0x4, fixed_abs, tag = 'smem constant byte address 0x4 - core index']
  #allocation1 [shape = 'u32[72,128]{1,0:T(1,128)}', space=vmem, size = 0x9000, scoped, tag = 'internal scratch']
  #allocation2 [shape = 'f32[2,256]{1,0:T(2,128)}', space=vmem, size = 0x800, scoped, tag = 'scratch operand']
  %s0 = inlined_call_operand.vmem [shape: bf16[128,512], index: 0, kind: input, shape index: {}]
  %s1 = inlined_call_operand.vmem [shape: bf16[32,128], index: 1, kind: input, shape index: {}]
  %s2 = inlined_call_operand.vmem [shape: f32[32,1], index: 2, kind: input, shape index: {}]
  %s3 = inlined_call_operand.vmem [shape: bf16[32,32], index: 3, kind: input, shape index: {}]
  %s4 = inlined_call_operand.vmem [shape: f32[32,1], index: 4, kind: input, shape index: {}]
  %s5 = inlined_call_operand.vmem [shape: f32[32,1], index: 5, kind: input, shape index: {}]
  %s6 = inlined_call_operand.vmem [shape: bf16[32,32], index: 6, kind: input, shape index: {}]
  %s7 = inlined_call_operand.vmem [shape: f32[32,1], index: 7, kind: input, shape index: {}]
  %s8 = inlined_call_operand.vmem [shape: f32[32,1], index: 8, kind: input, shape index: {}]
  %s9 = inlined_call_operand.vmem [shape: bf16[32,32], index: 9, kind: input, shape index: {}]
  %s10 = inlined_call_operand.vmem [shape: f32[32,1], index: 10, kind: input, shape index: {}]
  %s11 = inlined_call_operand.vmem [shape: f32[32,1], index: 11, kind: input, shape index: {}]
  %s12 = inlined_call_operand.vmem [shape: f32[32,1], index: 12, kind: input, shape index: {}]
  %s13 = inlined_call_operand.vmem [shape: f32[2,1], index: 13, kind: output, shape index: {}]
  %s14 = sld [smem:[#allocation0]]
  $region62: #{discriminator_forward.1} parent=0
    _
  %s16 = ssub.s32 1, %s14
  %s17 = scalar_select 0, %s16, %s14
  // Predicated region
  $region2: #{discriminator_forward.1} parent=0 // pred_check
    _
  $region3: #{discriminator_forward.1} parent=0 // pred_check_branch
    %19 = sbr.rel (0) target = $region5
  $region4: #{discriminator_forward.1} parent=0 // pred_region
    _
  $region5: #{discriminator_forward.1} parent=0 // pred_fallthru
    _
  // Predicated region
  $region6: #{discriminator_forward.1} parent=0 // pred_check
    _
  $region7: #{discriminator_forward.1} parent=0 // pred_check_branch
    %21 = sbr.rel (0) target = $region9
  $region8: #{discriminator_forward.1} parent=0 // pred_region
    _
  $region9: #{discriminator_forward.1} parent=0 // pred_fallthru
    _
  // Predicated region
  $region10: #{discriminator_forward.1} parent=0 // pred_check
    _
  $region11: #{discriminator_forward.1} parent=0 // pred_check_branch
    %23 = sbr.rel (0) target = $region13
  $region12: #{discriminator_forward.1} parent=0 // pred_region
    _
  $region13: #{discriminator_forward.1} parent=0 // pred_fallthru
    _
  // Predicated region
  $region14: #{discriminator_forward.1} parent=0 // pred_check
    _
  $region15: #{discriminator_forward.1} parent=0 // pred_check_branch
    %25 = sbr.rel (0) target = $region17
  $region16: #{discriminator_forward.1} parent=0 // pred_region
    _
  $region17: #{discriminator_forward.1} parent=0 // pred_fallthru
    _
  // Predicated region
  $region18: #{discriminator_forward.1} parent=0 // pred_check
    _
  $region19: #{discriminator_forward.1} parent=0 // pred_check_branch
    %27 = sbr.rel (0) target = $region21
  $region20: #{discriminator_forward.1} parent=0 // pred_region
    _
  $region21: #{discriminator_forward.1} parent=0 // pred_fallthru
    _
  // Predicated region
  $region22: #{discriminator_forward.1} parent=0 // pred_check
    _
  $region23: #{discriminator_forward.1} parent=0 // pred_check_branch
    %29 = sbr.rel (0) target = $region25
  $region24: #{discriminator_forward.1} parent=0 // pred_region
    _
  $region25: #{discriminator_forward.1} parent=0 // pred_fallthru
    _
  // Predicated region
  $region26: #{discriminator_forward.1} parent=0 // pred_check
    _
  $region27: #{discriminator_forward.1} parent=0 // pred_check_branch
    %31 = sbr.rel (0) target = $region29
  $region28: #{discriminator_forward.1} parent=0 // pred_region
    _
  $region29: #{discriminator_forward.1} parent=0 // pred_fallthru
    _
  // Predicated region
  $region30: #{discriminator_forward.1} parent=0 // pred_check
    _
  $region31: #{discriminator_forward.1} parent=0 // pred_check_branch
    %33 = sbr.rel (0) target = $region33
  $region32: #{discriminator_forward.1} parent=0 // pred_region
    _
  $region33: #{discriminator_forward.1} parent=0 // pred_fallthru
    _
  // Predicated region
  $region34: #{discriminator_forward.1} parent=0 // pred_check
    _
  $region35: #{discriminator_forward.1} parent=0 // pred_check_branch
    %35 = sbr.rel (0) target = $region37
  $region36: #{discriminator_forward.1} parent=0 // pred_region
    _
  $region37: #{discriminator_forward.1} parent=0 // pred_fallthru
    _
  // Predicated region
  $region38: #{discriminator_forward.1} parent=0 // pred_check
    _
  $region39: #{discriminator_forward.1} parent=0 // pred_check_branch
    %37 = sbr.rel (0) target = $region41
  $region40: #{discriminator_forward.1} parent=0 // pred_region
    _
  $region41: #{discriminator_forward.1} parent=0 // pred_fallthru
    _
  // Predicated region
  $region42: #{discriminator_forward.1} parent=0 // pred_check
    _
  $region43: #{discriminator_forward.1} parent=0 // pred_check_branch
    %39 = sbr.rel (0) target = $region45
  $region44: #{discriminator_forward.1} parent=0 // pred_region
    _
  $region45: #{discriminator_forward.1} parent=0 // pred_fallthru
    _
  // Predicated region
  $region46: #{discriminator_forward.1} parent=0 // pred_check
    _
  $region47: #{discriminator_forward.1} parent=0 // pred_check_branch
    %41 = sbr.rel (0) target = $region49
  $region48: #{discriminator_forward.1} parent=0 // pred_region
    _
  $region49: #{discriminator_forward.1} parent=0 // pred_fallthru
    _
  // Predicated region
  $region50: #{discriminator_forward.1} parent=0 // pred_check
    _
  $region51: #{discriminator_forward.1} parent=0 // pred_check_branch
    %43 = sbr.rel (0) target = $region53
  $region52: #{discriminator_forward.1} parent=0 // pred_region
    _
  $region53: #{discriminator_forward.1} parent=0 // pred_fallthru
    _
  %v45 = vld [vmem:[%s1] sm:$0xf]
  %v46 = vld [vmem:[%s1 + $0x4] sm:$0xf]
  %v47 = vld [vmem:[%s1 + $0x8] sm:$0xf]
  %v48 = vld [vmem:[%s1 + $0xc] sm:$0xf]
  %v49 = vld [vmem:[%s0] sm:$0xff]
  %v50 = vld [vmem:[%s0 + $0x8] sm:$0xff]
  %v51 = vld [vmem:[%s0 + $0x10] sm:$0xff]
  %v52 = vld [vmem:[%s0 + $0x18] sm:$0xff]
  %v53 = vld [vmem:[%s0 + $0x20] sm:$0xff]
  %v54 = vld [vmem:[%s0 + $0x28] sm:$0xff]
  %v55 = vld [vmem:[%s0 + $0x30] sm:$0xff]
  %v56 = vld [vmem:[%s0 + $0x38] sm:$0xff]
  %v57 = vld [vmem:[%s0 + $0x40] sm:$0xff]
  %v58 = vld [vmem:[%s0 + $0x48] sm:$0xff]
  %v59 = vld [vmem:[%s0 + $0x50] sm:$0xff]
  %v60 = vld [vmem:[%s0 + $0x58] sm:$0xff]
  %v61 = vld [vmem:[%s0 + $0x60] sm:$0xff]
  %v62 = vld [vmem:[%s0 + $0x68] sm:$0xff]
  %v63 = vld [vmem:[%s0 + $0x70] sm:$0xff]
  %v64 = vld [vmem:[%s0 + $0x78] sm:$0xff]
  %v65 = vld [vmem:[%s0 + $0x80] sm:$0xff]
  %v66 = vld [vmem:[%s0 + $0x88] sm:$0xff]
  %v67 = vld [vmem:[%s0 + $0x90] sm:$0xff]
  %v68 = vld [vmem:[%s0 + $0x98] sm:$0xff]
  %v69 = vld [vmem:[%s0 + $0xa0] sm:$0xff]
  %v70 = vld [vmem:[%s0 + $0xa8] sm:$0xff]
  %v71 = vld [vmem:[%s0 + $0xb0] sm:$0xff]
  %v72 = vld [vmem:[%s0 + $0xb8] sm:$0xff]
  %v73 = vld [vmem:[%s0 + $0xc0] sm:$0xff]
  %v74 = vld [vmem:[%s0 + $0xc8] sm:$0xff]
  %v75 = vld [vmem:[%s0 + $0xd0] sm:$0xff]
  %v76 = vld [vmem:[%s0 + $0xd8] sm:$0xff]
  %v77 = vld [vmem:[%s0 + $0xe0] sm:$0xff]
  %v78 = vld [vmem:[%s0 + $0xe8] sm:$0xff]
  %v79 = vld [vmem:[%s0 + $0xf0] sm:$0xff]
  %v80 = vld [vmem:[%s0 + $0xf8] sm:$0xff]
  %v81 = vld [vmem:[%s2] sm:$0xff]
  %v82 = vld [vmem:[%s2 + $0x8] sm:$0xff]
  %v83 = vld [vmem:[%s2 + $0x10] sm:$0xff]
  %v84 = vld [vmem:[%s2 + $0x18] sm:$0xff]
  %86 = vset.pattern.permute.xlu0 0
  %87 = vperm.xlu0 %86, %v81
  %v88 = vpop.permute.xlu0 %87
  %91 = vset.pattern.permute.xlu0 0
  %92 = vperm.xlu0 %91, %v82
  %v93 = vpop.permute.xlu0 %92
  %96 = vset.pattern.permute.xlu0 0
  %97 = vperm.xlu0 %96, %v83
  %v98 = vpop.permute.xlu0 %97
  %101 = vset.pattern.permute.xlu0 0
  %102 = vperm.xlu0 %101, %v84
  %v103 = vpop.permute.xlu0 %102
  %v109 = vunpack.c.l.b16 %v45
  %v110 = vunpack.c.l.b16 %v46
  %v111 = vunpack.c.l.b16 %v47
  %v112 = vunpack.c.l.b16 %v48
  %v113 = vpack.c.b16 %v110, %v109
  %v114 = vpack.c.b16 %v112, %v111
  %v149 = vunpack.c.l.b16 %v49
  %v150 = vunpack.c.h.b16 %v49
  %v151 = vunpack.c.l.b16 %v50
  %v152 = vunpack.c.h.b16 %v50
  %v153 = vunpack.c.l.b16 %v51
  %v154 = vunpack.c.h.b16 %v51
  %v155 = vunpack.c.l.b16 %v52
  %v156 = vunpack.c.h.b16 %v52
  %v157 = vunpack.c.l.b16 %v53
  %v158 = vunpack.c.h.b16 %v53
  %v159 = vunpack.c.l.b16 %v54
  %v160 = vunpack.c.h.b16 %v54
  %v161 = vunpack.c.l.b16 %v55
  %v162 = vunpack.c.h.b16 %v55
  %v163 = vunpack.c.l.b16 %v56
  %v164 = vunpack.c.h.b16 %v56
  %v165 = vunpack.c.l.b16 %v57
  %v166 = vunpack.c.h.b16 %v57
  %v167 = vunpack.c.l.b16 %v58
  %v168 = vunpack.c.h.b16 %v58
  %v169 = vunpack.c.l.b16 %v59
  %v170 = vunpack.c.h.b16 %v59
  %v171 = vunpack.c.l.b16 %v60
  %v172 = vunpack.c.h.b16 %v60
  %v173 = vunpack.c.l.b16 %v61
  %v174 = vunpack.c.h.b16 %v61
  %v175 = vunpack.c.l.b16 %v62
  %v176 = vunpack.c.h.b16 %v62
  %v177 = vunpack.c.l.b16 %v63
  %v178 = vunpack.c.h.b16 %v63
  %v179 = vunpack.c.l.b16 %v64
  %v180 = vunpack.c.h.b16 %v64
  %v181 = vunpack.c.l.b16 %v65
  %v182 = vunpack.c.h.b16 %v65
  %v183 = vunpack.c.l.b16 %v66
  %v184 = vunpack.c.h.b16 %v66
  %v185 = vunpack.c.l.b16 %v67
  %v186 = vunpack.c.h.b16 %v67
  %v187 = vunpack.c.l.b16 %v68
  %v188 = vunpack.c.h.b16 %v68
  %v189 = vunpack.c.l.b16 %v69
  %v190 = vunpack.c.h.b16 %v69
  %v191 = vunpack.c.l.b16 %v70
  %v192 = vunpack.c.h.b16 %v70
  %v193 = vunpack.c.l.b16 %v71
  %v194 = vunpack.c.h.b16 %v71
  %v195 = vunpack.c.l.b16 %v72
  %v196 = vunpack.c.h.b16 %v72
  %v197 = vunpack.c.l.b16 %v73
  %v198 = vunpack.c.h.b16 %v73
  %v199 = vunpack.c.l.b16 %v74
  %v200 = vunpack.c.h.b16 %v74
  %v201 = vunpack.c.l.b16 %v75
  %v202 = vunpack.c.h.b16 %v75
  %v203 = vunpack.c.l.b16 %v76
  %v204 = vunpack.c.h.b16 %v76
  %v205 = vunpack.c.l.b16 %v77
  %v206 = vunpack.c.h.b16 %v77
  %v207 = vunpack.c.l.b16 %v78
  %v208 = vunpack.c.h.b16 %v78
  %v209 = vunpack.c.l.b16 %v79
  %v210 = vunpack.c.h.b16 %v79
  %v211 = vunpack.c.l.b16 %v80
  %v212 = vunpack.c.h.b16 %v80
  %v213 = vpack.c.b16 %v153, %v149
  %v214 = vpack.c.b16 %v154, %v150
  %v215 = vpack.c.b16 %v155, %v151
  %v216 = vpack.c.b16 %v156, %v152
  %v217 = vpack.c.b16 %v161, %v157
  %v218 = vpack.c.b16 %v162, %v158
  %v219 = vpack.c.b16 %v163, %v159
  %v220 = vpack.c.b16 %v164, %v160
  %v221 = vpack.c.b16 %v169, %v165
  %v222 = vpack.c.b16 %v170, %v166
  %v223 = vpack.c.b16 %v171, %v167
  %v224 = vpack.c.b16 %v172, %v168
  %v225 = vpack.c.b16 %v177, %v173
  %v226 = vpack.c.b16 %v178, %v174
  %v227 = vpack.c.b16 %v179, %v175
  %v228 = vpack.c.b16 %v180, %v176
  %v229 = vpack.c.b16 %v185, %v181
  %v230 = vpack.c.b16 %v186, %v182
  %v231 = vpack.c.b16 %v187, %v183
  %v232 = vpack.c.b16 %v188, %v184
  %v233 = vpack.c.b16 %v193, %v189
  %v234 = vpack.c.b16 %v194, %v190
  %v235 = vpack.c.b16 %v195, %v191
  %v236 = vpack.c.b16 %v196, %v192
  %v237 = vpack.c.b16 %v201, %v197
  %v238 = vpack.c.b16 %v202, %v198
  %v239 = vpack.c.b16 %v203, %v199
  %v240 = vpack.c.b16 %v204, %v200
  %v241 = vpack.c.b16 %v209, %v205
  %v242 = vpack.c.b16 %v210, %v206
  %v243 = vpack.c.b16 %v211, %v207
  %v244 = vpack.c.b16 %v212, %v208
  %277 = vmatpush.bf16.msra.mxu0 %v241
  %278 = vmatpush.bf16.msra.mxu0 %v237
  %279 = vmatpush.bf16.msra.mxu0 %v233
  %280 = vmatpush.bf16.msra.mxu0 %v229
  %281 = vmatpush.bf16.msra.mxu0 %v225
  %282 = vmatpush.bf16.msra.mxu0 %v221
  %283 = vmatpush.bf16.msra.mxu0 %v217
  %284 = vmatpush.bf16.msra.mxu0 %v213
  %285 = vmatmul.bf16.gmra.mxu0 %v113
  %v286 = vpop.f32.mrf.mxu0
  %v287 = vadd.f32 %v88, %v286
  %v288 = vpop.f32.mrf.mxu0
  %v289 = vadd.f32 %v93, %v288
  %290 = vmatmul.bf16.gmra.mxu0 %v114
  %v291 = vpop.f32.mrf.mxu0
  %v292 = vadd.f32 %v98, %v291
  %v293 = vpop.f32.mrf.mxu0
  %v294 = vadd.f32 %v103, %v293
  %295 = vdwg.mxu0
  %296 = vmatpush.bf16.msra.mxu0 %v242
  %297 = vmatpush.bf16.msra.mxu0 %v238
  %298 = vmatpush.bf16.msra.mxu0 %v234
  %299 = vmatpush.bf16.msra.mxu0 %v230
  %300 = vmatpush.bf16.msra.mxu0 %v226
  %301 = vmatpush.bf16.msra.mxu0 %v222
  %302 = vmatpush.bf16.msra.mxu0 %v218
  %303 = vmatpush.bf16.msra.mxu0 %v214
  %304 = vmatmul.bf16.gmra.mxu0 %v113
  %v305 = vpop.f32.mrf.mxu0
  %v306 = vadd.f32 %v88, %v305
  %v307 = vpop.f32.mrf.mxu0
  %v308 = vadd.f32 %v93, %v307
  %309 = vmatmul.bf16.gmra.mxu0 %v114
  %v310 = vpop.f32.mrf.mxu0
  %v311 = vadd.f32 %v98, %v310
  %v312 = vpop.f32.mrf.mxu0
  %v313 = vadd.f32 %v103, %v312
  %314 = vdwg.mxu0
  %315 = vmatpush.bf16.msra.mxu0 %v243
  %316 = vmatpush.bf16.msra.mxu0 %v239
  %317 = vmatpush.bf16.msra.mxu0 %v235
  %318 = vmatpush.bf16.msra.mxu0 %v231
  %319 = vmatpush.bf16.msra.mxu0 %v227
  %320 = vmatpush.bf16.msra.mxu0 %v223
  %321 = vmatpush.bf16.msra.mxu0 %v219
  %322 = vmatpush.bf16.msra.mxu0 %v215
  %323 = vmatmul.bf16.gmra.mxu0 %v113
  %v324 = vpop.f32.mrf.mxu0
  %v325 = vadd.f32 %v88, %v324
  %v326 = vpop.f32.mrf.mxu0
  %v327 = vadd.f32 %v93, %v326
  %328 = vmatmul.bf16.gmra.mxu0 %v114
  %v329 = vpop.f32.mrf.mxu0
  %v330 = vadd.f32 %v98, %v329
  %v331 = vpop.f32.mrf.mxu0
  %v332 = vadd.f32 %v103, %v331
  %333 = vdwg.mxu0
  %334 = vmatpush.bf16.msra.mxu0 %v244
  %335 = vmatpush.bf16.msra.mxu0 %v240
  %336 = vmatpush.bf16.msra.mxu0 %v236
  %337 = vmatpush.bf16.msra.mxu0 %v232
  %338 = vmatpush.bf16.msra.mxu0 %v228
  %339 = vmatpush.bf16.msra.mxu0 %v224
  %340 = vmatpush.bf16.msra.mxu0 %v220
  %341 = vmatpush.bf16.msra.mxu0 %v216
  %342 = vmatmul.bf16.gmra.mxu0 %v113
  %v343 = vpop.f32.mrf.mxu0
  %v344 = vadd.f32 %v88, %v343
  %v345 = vpop.f32.mrf.mxu0
  %v346 = vadd.f32 %v93, %v345
  %347 = vmatmul.bf16.gmra.mxu0 %v114
  %v348 = vpop.f32.mrf.mxu0
  %v349 = vadd.f32 %v98, %v348
  %v350 = vpop.f32.mrf.mxu0
  %v351 = vadd.f32 %v103, %v350
  %352 = vdwg.mxu0
  %vm353 = vcmp.ge.f32.partialorder %v287, 0.0
  %vm354 = vcmp.ge.f32.partialorder %v306, 0.0
  %vm355 = vcmp.ge.f32.partialorder %v325, 0.0
  %vm356 = vcmp.ge.f32.partialorder %v344, 0.0
  %vm357 = vcmp.ge.f32.partialorder %v289, 0.0
  %vm358 = vcmp.ge.f32.partialorder %v308, 0.0
  %vm359 = vcmp.ge.f32.partialorder %v327, 0.0
  %vm360 = vcmp.ge.f32.partialorder %v346, 0.0
  %vm361 = vcmp.ge.f32.partialorder %v292, 0.0
  %vm362 = vcmp.ge.f32.partialorder %v311, 0.0
  %vm363 = vcmp.ge.f32.partialorder %v330, 0.0
  %vm364 = vcmp.ge.f32.partialorder %v349, 0.0
  %vm365 = vcmp.ge.f32.partialorder %v294, 0.0
  %vm366 = vcmp.ge.f32.partialorder %v313, 0.0
  %vm367 = vcmp.ge.f32.partialorder %v332, 0.0
  %vm368 = vcmp.ge.f32.partialorder %v351, 0.0
  %v369 = vmul.f32 %v287, 0.2
  %v370 = vmul.f32 %v306, 0.2
  %v371 = vmul.f32 %v325, 0.2
  %v372 = vmul.f32 %v344, 0.2
  %v373 = vmul.f32 %v289, 0.2
  %v374 = vmul.f32 %v308, 0.2
  %v375 = vmul.f32 %v327, 0.2
  %v376 = vmul.f32 %v346, 0.2
  %v377 = vmul.f32 %v292, 0.2
  %v378 = vmul.f32 %v311, 0.2
  %v379 = vmul.f32 %v330, 0.2
  %v380 = vmul.f32 %v349, 0.2
  %v381 = vmul.f32 %v294, 0.2
  %v382 = vmul.f32 %v313, 0.2
  %v383 = vmul.f32 %v332, 0.2
  %v384 = vmul.f32 %v351, 0.2
  %v385 = vsel %vm353, %v287, %v369
  %v386 = vsel %vm354, %v306, %v370
  %v387 = vsel %vm355, %v325, %v371
  %v388 = vsel %vm356, %v344, %v372
  %v389 = vsel %vm357, %v289, %v373
  %v390 = vsel %vm358, %v308, %v374
  %v391 = vsel %vm359, %v327, %v375
  %v392 = vsel %vm360, %v346, %v376
  %v393 = vsel %vm361, %v292, %v377
  %v394 = vsel %vm362, %v311, %v378
  %v395 = vsel %vm363, %v330, %v379
  %v396 = vsel %vm364, %v349, %v380
  %v397 = vsel %vm365, %v294, %v381
  %v398 = vsel %vm366, %v313, %v382
  %v399 = vsel %vm367, %v332, %v383
  %v400 = vsel %vm368, %v351, %v384
  %v401 = vpack.c.bf16 %v389, %v385
  %v402 = vpack.c.bf16 %v390, %v386
  %v403 = vpack.c.bf16 %v391, %v387
  %v404 = vpack.c.bf16 %v392, %v388
  %v405 = vpack.c.bf16 %v397, %v393
  %v406 = vpack.c.bf16 %v398, %v394
  %v407 = vpack.c.bf16 %v399, %v395
  %v408 = vpack.c.bf16 %v400, %v396
  %v409 = vld [vmem:[%s3] sm:$0xf]
  %v410 = vld [vmem:[%s3 + $0x4] sm:$0xf]
  %v411 = vld [vmem:[%s3 + $0x8] sm:$0xf]
  %v412 = vld [vmem:[%s3 + $0xc] sm:$0xf]
  %v417 = vunpack.c.l.b16 %v409
  %v418 = vunpack.c.l.b16 %v410
  %v419 = vunpack.c.l.b16 %v411
  %v420 = vunpack.c.l.b16 %v412
  %v421 = vpack.c.b16 %v418, %v417
  %v422 = vpack.c.b16 %v420, %v419
  %vm423 = vcmask 261120
  %v425 = vsel %vm423, %v421, 0
  %v428 = vsel %vm423, %v422, 0
  %430 = vmatpush.bf16.msra.mxu0 0
  %431 = vmatpush.bf16.msra.mxu0 0
  %432 = vmatpush.bf16.msra.mxu0 0
  %433 = vmatpush.bf16.msra.mxu0 0
  %434 = vmatpush.bf16.msra.mxu0 0
  %435 = vmatpush.bf16.msra.mxu0 0
  %436 = vmatpush.bf16.msra.mxu0 %v405
  %437 = vmatpush.bf16.msra.mxu0 %v401
  %438 = vmatmul.bf16.gmra.mxu0 %v425
  %v439 = vpop.f32.mrf.mxu0
  %v440 = vadd.f32 0.0, %v439
  %v441 = vpop.f32.mrf.mxu0
  %v442 = vadd.f32 0.0, %v441
  %443 = vmatmul.bf16.gmra.mxu0 %v428
  %v444 = vpop.f32.mrf.mxu0
  %v445 = vadd.f32 0.0, %v444
  %v446 = vpop.f32.mrf.mxu0
  %v447 = vadd.f32 0.0, %v446
  %448 = vdwg.mxu0
  %449 = vmatpush.bf16.msra.mxu0 0
  %450 = vmatpush.bf16.msra.mxu0 0
  %451 = vmatpush.bf16.msra.mxu0 0
  %452 = vmatpush.bf16.msra.mxu0 0
  %453 = vmatpush.bf16.msra.mxu0 0
  %454 = vmatpush.bf16.msra.mxu0 0
  %455 = vmatpush.bf16.msra.mxu0 %v406
  %456 = vmatpush.bf16.msra.mxu0 %v402
  %457 = vmatmul.bf16.gmra.mxu0 %v425
  %v458 = vpop.f32.mrf.mxu0
  %v459 = vadd.f32 0.0, %v458
  %v460 = vpop.f32.mrf.mxu0
  %v461 = vadd.f32 0.0, %v460
  %462 = vmatmul.bf16.gmra.mxu0 %v428
  %v463 = vpop.f32.mrf.mxu0
  %v464 = vadd.f32 0.0, %v463
  %v465 = vpop.f32.mrf.mxu0
  %v466 = vadd.f32 0.0, %v465
  %467 = vdwg.mxu0
  %468 = vmatpush.bf16.msra.mxu0 0
  %469 = vmatpush.bf16.msra.mxu0 0
  %470 = vmatpush.bf16.msra.mxu0 0
  %471 = vmatpush.bf16.msra.mxu0 0
  %472 = vmatpush.bf16.msra.mxu0 0
  %473 = vmatpush.bf16.msra.mxu0 0
  %474 = vmatpush.bf16.msra.mxu0 %v407
  %475 = vmatpush.bf16.msra.mxu0 %v403
  %476 = vmatmul.bf16.gmra.mxu0 %v425
  %v477 = vpop.f32.mrf.mxu0
  %v478 = vadd.f32 0.0, %v477
  %v479 = vpop.f32.mrf.mxu0
  %v480 = vadd.f32 0.0, %v479
  %481 = vmatmul.bf16.gmra.mxu0 %v428
  %v482 = vpop.f32.mrf.mxu0
  %v483 = vadd.f32 0.0, %v482
  %v484 = vpop.f32.mrf.mxu0
  %v485 = vadd.f32 0.0, %v484
  %486 = vdwg.mxu0
  %487 = vmatpush.bf16.msra.mxu0 0
  %488 = vmatpush.bf16.msra.mxu0 0
  %489 = vmatpush.bf16.msra.mxu0 0
  %490 = vmatpush.bf16.msra.mxu0 0
  %491 = vmatpush.bf16.msra.mxu0 0
  %492 = vmatpush.bf16.msra.mxu0 0
  %493 = vmatpush.bf16.msra.mxu0 %v408
  %494 = vmatpush.bf16.msra.mxu0 %v404
  %495 = vmatmul.bf16.gmra.mxu0 %v425
  %v496 = vpop.f32.mrf.mxu0
  %v497 = vadd.f32 0.0, %v496
  %v498 = vpop.f32.mrf.mxu0
  %v499 = vadd.f32 0.0, %v498
  %500 = vmatmul.bf16.gmra.mxu0 %v428
  %v501 = vpop.f32.mrf.mxu0
  %v502 = vadd.f32 0.0, %v501
  %v503 = vpop.f32.mrf.mxu0
  %v504 = vadd.f32 0.0, %v503
  %505 = vdwg.mxu0
  %v506 = vadd.f32 %v440, %v459
  %v507 = vadd.f32 %v506, %v478
  %v508 = vadd.f32 %v507, %v497
  %509 = vadd.xlane.f32.xlu0 %v508
  %v510 = vpop.xlane.xlu0 %509
  %v511 = vadd.f32 %v442, %v461
  %v512 = vadd.f32 %v511, %v480
  %v513 = vadd.f32 %v512, %v499
  %514 = vadd.xlane.f32.xlu0 %v513
  %v515 = vpop.xlane.xlu0 %514
  %v516 = vadd.f32 %v445, %v464
  %v517 = vadd.f32 %v516, %v483
  %v518 = vadd.f32 %v517, %v502
  %519 = vadd.xlane.f32.xlu0 %v518
  %v520 = vpop.xlane.xlu0 %519
  %v521 = vadd.f32 %v447, %v466
  %v522 = vadd.f32 %v521, %v485
  %v523 = vadd.f32 %v522, %v504
  %524 = vadd.xlane.f32.xlu0 %v523
  %v525 = vpop.xlane.xlu0 %524
  %v526 = vmul.f32 %v510, 0.001953125
  %v527 = vmul.f32 %v515, 0.001953125
  %v528 = vmul.f32 %v520, 0.001953125
  %v529 = vmul.f32 %v525, 0.001953125
  %v530 = vsub.f32 %v440, %v526
  %v531 = vsub.f32 %v459, %v526
  %v532 = vsub.f32 %v478, %v526
  %v533 = vsub.f32 %v497, %v526
  %v534 = vsub.f32 %v442, %v527
  %v535 = vsub.f32 %v461, %v527
  %v536 = vsub.f32 %v480, %v527
  %v537 = vsub.f32 %v499, %v527
  %v538 = vsub.f32 %v445, %v528
  %v539 = vsub.f32 %v464, %v528
  %v540 = vsub.f32 %v483, %v528
  %v541 = vsub.f32 %v502, %v528
  %v542 = vsub.f32 %v447, %v529
  %v543 = vsub.f32 %v466, %v529
  %v544 = vsub.f32 %v485, %v529
  %v545 = vsub.f32 %v504, %v529
  %v546 = vmul.f32 %v530, %v530
  %v547 = vmul.f32 %v531, %v531
  %v548 = vmul.f32 %v532, %v532
  %v549 = vmul.f32 %v533, %v533
  %v550 = vmul.f32 %v534, %v534
  %v551 = vmul.f32 %v535, %v535
  %v552 = vmul.f32 %v536, %v536
  %v553 = vmul.f32 %v537, %v537
  %v554 = vmul.f32 %v538, %v538
  %v555 = vmul.f32 %v539, %v539
  %v556 = vmul.f32 %v540, %v540
  %v557 = vmul.f32 %v541, %v541
  %v558 = vmul.f32 %v542, %v542
  %v559 = vmul.f32 %v543, %v543
  %v560 = vmul.f32 %v544, %v544
  %v561 = vmul.f32 %v545, %v545
  %v562 = vadd.f32 %v546, %v547
  %v563 = vadd.f32 %v562, %v548
  %v564 = vadd.f32 %v563, %v549
  %565 = vadd.xlane.f32.xlu0 %v564
  %v566 = vpop.xlane.xlu0 %565
  %v567 = vadd.f32 %v550, %v551
  %v568 = vadd.f32 %v567, %v552
  %v569 = vadd.f32 %v568, %v553
  %570 = vadd.xlane.f32.xlu0 %v569
  %v571 = vpop.xlane.xlu0 %570
  %v572 = vadd.f32 %v554, %v555
  %v573 = vadd.f32 %v572, %v556
  %v574 = vadd.f32 %v573, %v557
  %575 = vadd.xlane.f32.xlu0 %v574
  %v576 = vpop.xlane.xlu0 %575
  %v577 = vadd.f32 %v558, %v559
  %v578 = vadd.f32 %v577, %v560
  %v579 = vadd.f32 %v578, %v561
  %580 = vadd.xlane.f32.xlu0 %v579
  %v581 = vpop.xlane.xlu0 %580
  %v582 = vmul.f32 %v566, 0.001953125
  %v583 = vmul.f32 %v571, 0.001953125
  %v584 = vmul.f32 %v576, 0.001953125
  %v585 = vmul.f32 %v581, 0.001953125
  %v586 = vadd.f32 %v582, 1e-05
  %v587 = vadd.f32 %v583, 1e-05
  %v588 = vadd.f32 %v584, 1e-05
  %v589 = vadd.f32 %v585, 1e-05
  %v590 = vrsqrt.pop %v586
  %v591 = vmul.f32 %v590, %v586
  %v592 = vmul.f32 %v591, %v590
  %v593 = vmul.f32 0.5, %v592
  %v594 = vsub.f32 1.5, %v593
  %v595 = vmul.f32 %v590, %v594
  %vm596 = vweird.f32 %v586
  %vm597 = vweird.f32 %v590
  %vm598 = vmor %vm596, %vm597
  %v599 = vsel %vm598, %v590, %v595
  %v600 = vrsqrt.pop %v587
  %v601 = vmul.f32 %v600, %v587
  %v602 = vmul.f32 %v601, %v600
  %v603 = vmul.f32 0.5, %v602
  %v604 = vsub.f32 1.5, %v603
  %v605 = vmul.f32 %v600, %v604
  %vm606 = vweird.f32 %v587
  %vm607 = vweird.f32 %v600
  %vm608 = vmor %vm606, %vm607
  %v609 = vsel %vm608, %v600, %v605
  %v610 = vrsqrt.pop %v588
  %v611 = vmul.f32 %v610, %v588
  %v612 = vmul.f32 %v611, %v610
  %v613 = vmul.f32 0.5, %v612
  %v614 = vsub.f32 1.5, %v613
  %v615 = vmul.f32 %v610, %v614
  %vm616 = vweird.f32 %v588
  %vm617 = vweird.f32 %v610
  %vm618 = vmor %vm616, %vm617
  %v619 = vsel %vm618, %v610, %v615
  %v620 = vrsqrt.pop %v589
  %v621 = vmul.f32 %v620, %v589
  %v622 = vmul.f32 %v621, %v620
  %v623 = vmul.f32 0.5, %v622
  %v624 = vsub.f32 1.5, %v623
  %v625 = vmul.f32 %v620, %v624
  %vm626 = vweird.f32 %v589
  %vm627 = vweird.f32 %v620
  %vm628 = vmor %vm626, %vm627
  %v629 = vsel %vm628, %v620, %v625
  %v630 = vld [vmem:[%s4] sm:$0xff]
  %v631 = vld [vmem:[%s4 + $0x8] sm:$0xff]
  %v632 = vld [vmem:[%s4 + $0x10] sm:$0xff]
  %v633 = vld [vmem:[%s4 + $0x18] sm:$0xff]
  %v634 = vmul.f32 %v599, %v630
  %v635 = vmul.f32 %v609, %v631
  %v636 = vmul.f32 %v619, %v632
  %v637 = vmul.f32 %v629, %v633
  %639 = vset.pattern.permute.xlu0 0
  %640 = vperm.xlu0 %639, %v634
  %v641 = vpop.permute.xlu0 %640
  %644 = vset.pattern.permute.xlu0 0
  %645 = vperm.xlu0 %644, %v635
  %v646 = vpop.permute.xlu0 %645
  %649 = vset.pattern.permute.xlu0 0
  %650 = vperm.xlu0 %649, %v636
  %v651 = vpop.permute.xlu0 %650
  %654 = vset.pattern.permute.xlu0 0
  %655 = vperm.xlu0 %654, %v637
  %v656 = vpop.permute.xlu0 %655
  %v658 = vmul.f32 %v530, %v641
  %v659 = vmul.f32 %v531, %v641
  %v660 = vmul.f32 %v532, %v641
  %v661 = vmul.f32 %v533, %v641
  %v662 = vmul.f32 %v534, %v646
  %v663 = vmul.f32 %v535, %v646
  %v664 = vmul.f32 %v536, %v646
  %v665 = vmul.f32 %v537, %v646
  %v666 = vmul.f32 %v538, %v651
  %v667 = vmul.f32 %v539, %v651
  %v668 = vmul.f32 %v540, %v651
  %v669 = vmul.f32 %v541, %v651
  %v670 = vmul.f32 %v542, %v656
  %v671 = vmul.f32 %v543, %v656
  %v672 = vmul.f32 %v544, %v656
  %v673 = vmul.f32 %v545, %v656
  %v674 = vld [vmem:[%s5] sm:$0xff]
  %v675 = vld [vmem:[%s5 + $0x8] sm:$0xff]
  %v676 = vld [vmem:[%s5 + $0x10] sm:$0xff]
  %v677 = vld [vmem:[%s5 + $0x18] sm:$0xff]
  %679 = vset.pattern.permute.xlu0 0
  %680 = vperm.xlu0 %679, %v674
  %v681 = vpop.permute.xlu0 %680
  %684 = vset.pattern.permute.xlu0 0
  %685 = vperm.xlu0 %684, %v675
  %v686 = vpop.permute.xlu0 %685
  %689 = vset.pattern.permute.xlu0 0
  %690 = vperm.xlu0 %689, %v676
  %v691 = vpop.permute.xlu0 %690
  %694 = vset.pattern.permute.xlu0 0
  %695 = vperm.xlu0 %694, %v677
  %v696 = vpop.permute.xlu0 %695
  %v698 = vadd.f32 %v658, %v681
  %v699 = vadd.f32 %v659, %v681
  %v700 = vadd.f32 %v660, %v681
  %v701 = vadd.f32 %v661, %v681
  %v702 = vadd.f32 %v662, %v686
  %v703 = vadd.f32 %v663, %v686
  %v704 = vadd.f32 %v664, %v686
  %v705 = vadd.f32 %v665, %v686
  %v706 = vadd.f32 %v666, %v691
  %v707 = vadd.f32 %v667, %v691
  %v708 = vadd.f32 %v668, %v691
  %v709 = vadd.f32 %v669, %v691
  %v710 = vadd.f32 %v670, %v696
  %v711 = vadd.f32 %v671, %v696
  %v712 = vadd.f32 %v672, %v696
  %v713 = vadd.f32 %v673, %v696
  %vm714 = vcmp.ge.f32.partialorder %v698, 0.0
  %vm715 = vcmp.ge.f32.partialorder %v699, 0.0
  %vm716 = vcmp.ge.f32.partialorder %v700, 0.0
  %vm717 = vcmp.ge.f32.partialorder %v701, 0.0
  %vm718 = vcmp.ge.f32.partialorder %v702, 0.0
  %vm719 = vcmp.ge.f32.partialorder %v703, 0.0
  %vm720 = vcmp.ge.f32.partialorder %v704, 0.0
  %vm721 = vcmp.ge.f32.partialorder %v705, 0.0
  %vm722 = vcmp.ge.f32.partialorder %v706, 0.0
  %vm723 = vcmp.ge.f32.partialorder %v707, 0.0
  %vm724 = vcmp.ge.f32.partialorder %v708, 0.0
  %vm725 = vcmp.ge.f32.partialorder %v709, 0.0
  %vm726 = vcmp.ge.f32.partialorder %v710, 0.0
  %vm727 = vcmp.ge.f32.partialorder %v711, 0.0
  %vm728 = vcmp.ge.f32.partialorder %v712, 0.0
  %vm729 = vcmp.ge.f32.partialorder %v713, 0.0
  %v730 = vmul.f32 %v698, 0.2
  %v731 = vmul.f32 %v699, 0.2
  %v732 = vmul.f32 %v700, 0.2
  %v733 = vmul.f32 %v701, 0.2
  %v734 = vmul.f32 %v702, 0.2
  %v735 = vmul.f32 %v703, 0.2
  %v736 = vmul.f32 %v704, 0.2
  %v737 = vmul.f32 %v705, 0.2
  %v738 = vmul.f32 %v706, 0.2
  %v739 = vmul.f32 %v707, 0.2
  %v740 = vmul.f32 %v708, 0.2
  %v741 = vmul.f32 %v709, 0.2
  %v742 = vmul.f32 %v710, 0.2
  %v743 = vmul.f32 %v711, 0.2
  %v744 = vmul.f32 %v712, 0.2
  %v745 = vmul.f32 %v713, 0.2
  %v746 = vsel %vm714, %v698, %v730
  %v747 = vsel %vm715, %v699, %v731
  %v748 = vsel %vm716, %v700, %v732
  %v749 = vsel %vm717, %v701, %v733
  %v750 = vsel %vm718, %v702, %v734
  %v751 = vsel %vm719, %v703, %v735
  %v752 = vsel %vm720, %v704, %v736
  %v753 = vsel %vm721, %v705, %v737
  %v754 = vsel %vm722, %v706, %v738
  %v755 = vsel %vm723, %v707, %v739
  %v756 = vsel %vm724, %v708, %v740
  %v757 = vsel %vm725, %v709, %v741
  %v758 = vsel %vm726, %v710, %v742
  %v759 = vsel %vm727, %v711, %v743
  %v760 = vsel %vm728, %v712, %v744
  %v761 = vsel %vm729, %v713, %v745
  %v762 = vpack.c.bf16 %v750, %v746
  %v763 = vpack.c.bf16 %v751, %v747
  %v764 = vpack.c.bf16 %v752, %v748
  %v765 = vpack.c.bf16 %v753, %v749
  %v766 = vpack.c.bf16 %v758, %v754
  %v767 = vpack.c.bf16 %v759, %v755
  %v768 = vpack.c.bf16 %v760, %v756
  %v769 = vpack.c.bf16 %v761, %v757
  %v770 = vld [vmem:[%s6] sm:$0xf]
  %v771 = vld [vmem:[%s6 + $0x4] sm:$0xf]
  %v772 = vld [vmem:[%s6 + $0x8] sm:$0xf]
  %v773 = vld [vmem:[%s6 + $0xc] sm:$0xf]
  %v778 = vunpack.c.l.b16 %v770
  %v779 = vunpack.c.l.b16 %v771
  %v780 = vunpack.c.l.b16 %v772
  %v781 = vunpack.c.l.b16 %v773
  %v782 = vpack.c.b16 %v779, %v778
  %v783 = vpack.c.b16 %v781, %v780
  %v785 = vsel %vm423, %v782, 0
  %v788 = vsel %vm423, %v783, 0
  %790 = vmatpush.bf16.msra.mxu0 0
  %791 = vmatpush.bf16.msra.mxu0 0
  %792 = vmatpush.bf16.msra.mxu0 0
  %793 = vmatpush.bf16.msra.mxu0 0
  %794 = vmatpush.bf16.msra.mxu0 0
  %795 = vmatpush.bf16.msra.mxu0 0
  %796 = vmatpush.bf16.msra.mxu0 %v766
  %797 = vmatpush.bf16.msra.mxu0 %v762
  %798 = vmatmul.bf16.gmra.mxu0 %v785
  %v799 = vpop.f32.mrf.mxu0
  %v800 = vadd.f32 0.0, %v799
  %v801 = vpop.f32.mrf.mxu0
  %v802 = vadd.f32 0.0, %v801
  %803 = vmatmul.bf16.gmra.mxu0 %v788
  %v804 = vpop.f32.mrf.mxu0
  %v805 = vadd.f32 0.0, %v804
  %v806 = vpop.f32.mrf.mxu0
  %v807 = vadd.f32 0.0, %v806
  %808 = vdwg.mxu0
  %809 = vmatpush.bf16.msra.mxu0 0
  %810 = vmatpush.bf16.msra.mxu0 0
  %811 = vmatpush.bf16.msra.mxu0 0
  %812 = vmatpush.bf16.msra.mxu0 0
  %813 = vmatpush.bf16.msra.mxu0 0
  %814 = vmatpush.bf16.msra.mxu0 0
  %815 = vmatpush.bf16.msra.mxu0 %v767
  %816 = vmatpush.bf16.msra.mxu0 %v763
  %817 = vmatmul.bf16.gmra.mxu0 %v785
  %v818 = vpop.f32.mrf.mxu0
  %v819 = vadd.f32 0.0, %v818
  %v820 = vpop.f32.mrf.mxu0
  %v821 = vadd.f32 0.0, %v820
  %822 = vmatmul.bf16.gmra.mxu0 %v788
  %v823 = vpop.f32.mrf.mxu0
  %v824 = vadd.f32 0.0, %v823
  %v825 = vpop.f32.mrf.mxu0
  %v826 = vadd.f32 0.0, %v825
  %827 = vdwg.mxu0
  %828 = vmatpush.bf16.msra.mxu0 0
  %829 = vmatpush.bf16.msra.mxu0 0
  %830 = vmatpush.bf16.msra.mxu0 0
  %831 = vmatpush.bf16.msra.mxu0 0
  %832 = vmatpush.bf16.msra.mxu0 0
  %833 = vmatpush.bf16.msra.mxu0 0
  %834 = vmatpush.bf16.msra.mxu0 %v768
  %835 = vmatpush.bf16.msra.mxu0 %v764
  %836 = vmatmul.bf16.gmra.mxu0 %v785
  %v837 = vpop.f32.mrf.mxu0
  %v838 = vadd.f32 0.0, %v837
  %v839 = vpop.f32.mrf.mxu0
  %v840 = vadd.f32 0.0, %v839
  %841 = vmatmul.bf16.gmra.mxu0 %v788
  %v842 = vpop.f32.mrf.mxu0
  %v843 = vadd.f32 0.0, %v842
  %v844 = vpop.f32.mrf.mxu0
  %v845 = vadd.f32 0.0, %v844
  %846 = vdwg.mxu0
  %847 = vmatpush.bf16.msra.mxu0 0
  %848 = vmatpush.bf16.msra.mxu0 0
  %849 = vmatpush.bf16.msra.mxu0 0
  %850 = vmatpush.bf16.msra.mxu0 0
  %851 = vmatpush.bf16.msra.mxu0 0
  %852 = vmatpush.bf16.msra.mxu0 0
  %853 = vmatpush.bf16.msra.mxu0 %v769
  %854 = vmatpush.bf16.msra.mxu0 %v765
  %855 = vmatmul.bf16.gmra.mxu0 %v785
  %v856 = vpop.f32.mrf.mxu0
  %v857 = vadd.f32 0.0, %v856
  %v858 = vpop.f32.mrf.mxu0
  %v859 = vadd.f32 0.0, %v858
  %860 = vmatmul.bf16.gmra.mxu0 %v788
  %v861 = vpop.f32.mrf.mxu0
  %v862 = vadd.f32 0.0, %v861
  %v863 = vpop.f32.mrf.mxu0
  %v864 = vadd.f32 0.0, %v863
  %865 = vdwg.mxu0
  %v866 = vadd.f32 %v800, %v819
  %v867 = vadd.f32 %v866, %v838
  %v868 = vadd.f32 %v867, %v857
  %869 = vadd.xlane.f32.xlu0 %v868
  %v870 = vpop.xlane.xlu0 %869
  %v871 = vadd.f32 %v802, %v821
  %v872 = vadd.f32 %v871, %v840
  %v873 = vadd.f32 %v872, %v859
  %874 = vadd.xlane.f32.xlu0 %v873
  %v875 = vpop.xlane.xlu0 %874
  %v876 = vadd.f32 %v805, %v824
  %v877 = vadd.f32 %v876, %v843
  %v878 = vadd.f32 %v877, %v862
  %879 = vadd.xlane.f32.xlu0 %v878
  %v880 = vpop.xlane.xlu0 %879
  %v881 = vadd.f32 %v807, %v826
  %v882 = vadd.f32 %v881, %v845
  %v883 = vadd.f32 %v882, %v864
  %884 = vadd.xlane.f32.xlu0 %v883
  %v885 = vpop.xlane.xlu0 %884
  %v886 = vmul.f32 %v870, 0.001953125
  %v887 = vmul.f32 %v875, 0.001953125
  %v888 = vmul.f32 %v880, 0.001953125
  %v889 = vmul.f32 %v885, 0.001953125
  %v890 = vsub.f32 %v800, %v886
  %v891 = vsub.f32 %v819, %v886
  %v892 = vsub.f32 %v838, %v886
  %v893 = vsub.f32 %v857, %v886
  %v894 = vsub.f32 %v802, %v887
  %v895 = vsub.f32 %v821, %v887
  %v896 = vsub.f32 %v840, %v887
  %v897 = vsub.f32 %v859, %v887
  %v898 = vsub.f32 %v805, %v888
  %v899 = vsub.f32 %v824, %v888
  %v900 = vsub.f32 %v843, %v888
  %v901 = vsub.f32 %v862, %v888
  %v902 = vsub.f32 %v807, %v889
  %v903 = vsub.f32 %v826, %v889
  %v904 = vsub.f32 %v845, %v889
  %v905 = vsub.f32 %v864, %v889
  %v906 = vmul.f32 %v890, %v890
  %v907 = vmul.f32 %v891, %v891
  %v908 = vmul.f32 %v892, %v892
  %v909 = vmul.f32 %v893, %v893
  %v910 = vmul.f32 %v894, %v894
  %v911 = vmul.f32 %v895, %v895
  %v912 = vmul.f32 %v896, %v896
  %v913 = vmul.f32 %v897, %v897
  %v914 = vmul.f32 %v898, %v898
  %v915 = vmul.f32 %v899, %v899
  %v916 = vmul.f32 %v900, %v900
  %v917 = vmul.f32 %v901, %v901
  %v918 = vmul.f32 %v902, %v902
  %v919 = vmul.f32 %v903, %v903
  %v920 = vmul.f32 %v904, %v904
  %v921 = vmul.f32 %v905, %v905
  %v922 = vadd.f32 %v906, %v907
  %v923 = vadd.f32 %v922, %v908
  %v924 = vadd.f32 %v923, %v909
  %925 = vadd.xlane.f32.xlu0 %v924
  %v926 = vpop.xlane.xlu0 %925
  %v927 = vadd.f32 %v910, %v911
  %v928 = vadd.f32 %v927, %v912
  %v929 = vadd.f32 %v928, %v913
  %930 = vadd.xlane.f32.xlu0 %v929
  %v931 = vpop.xlane.xlu0 %930
  %v932 = vadd.f32 %v914, %v915
  %v933 = vadd.f32 %v932, %v916
  %v934 = vadd.f32 %v933, %v917
  %935 = vadd.xlane.f32.xlu0 %v934
  %v936 = vpop.xlane.xlu0 %935
  %v937 = vadd.f32 %v918, %v919
  %v938 = vadd.f32 %v937, %v920
  %v939 = vadd.f32 %v938, %v921
  %940 = vadd.xlane.f32.xlu0 %v939
  %v941 = vpop.xlane.xlu0 %940
  %v942 = vmul.f32 %v926, 0.001953125
  %v943 = vmul.f32 %v931, 0.001953125
  %v944 = vmul.f32 %v936, 0.001953125
  %v945 = vmul.f32 %v941, 0.001953125
  %v946 = vadd.f32 %v942, 1e-05
  %v947 = vadd.f32 %v943, 1e-05
  %v948 = vadd.f32 %v944, 1e-05
  %v949 = vadd.f32 %v945, 1e-05
  %v950 = vrsqrt.pop %v946
  %v951 = vmul.f32 %v950, %v946
  %v952 = vmul.f32 %v951, %v950
  %v953 = vmul.f32 0.5, %v952
  %v954 = vsub.f32 1.5, %v953
  %v955 = vmul.f32 %v950, %v954
  %vm956 = vweird.f32 %v946
  %vm957 = vweird.f32 %v950
  %vm958 = vmor %vm956, %vm957
  %v959 = vsel %vm958, %v950, %v955
  %v960 = vrsqrt.pop %v947
  %v961 = vmul.f32 %v960, %v947
  %v962 = vmul.f32 %v961, %v960
  %v963 = vmul.f32 0.5, %v962
  %v964 = vsub.f32 1.5, %v963
  %v965 = vmul.f32 %v960, %v964
  %vm966 = vweird.f32 %v947
  %vm967 = vweird.f32 %v960
  %vm968 = vmor %vm966, %vm967
  %v969 = vsel %vm968, %v960, %v965
  %v970 = vrsqrt.pop %v948
  %v971 = vmul.f32 %v970, %v948
  %v972 = vmul.f32 %v971, %v970
  %v973 = vmul.f32 0.5, %v972
  %v974 = vsub.f32 1.5, %v973
  %v975 = vmul.f32 %v970, %v974
  %vm976 = vweird.f32 %v948
  %vm977 = vweird.f32 %v970
  %vm978 = vmor %vm976, %vm977
  %v979 = vsel %vm978, %v970, %v975
  %v980 = vrsqrt.pop %v949
  %v981 = vmul.f32 %v980, %v949
  %v982 = vmul.f32 %v981, %v980
  %v983 = vmul.f32 0.5, %v982
  %v984 = vsub.f32 1.5, %v983
  %v985 = vmul.f32 %v980, %v984
  %vm986 = vweird.f32 %v949
  %vm987 = vweird.f32 %v980
  %vm988 = vmor %vm986, %vm987
  %v989 = vsel %vm988, %v980, %v985
  %v990 = vld [vmem:[%s7] sm:$0xff]
  %v991 = vld [vmem:[%s7 + $0x8] sm:$0xff]
  %v992 = vld [vmem:[%s7 + $0x10] sm:$0xff]
  %v993 = vld [vmem:[%s7 + $0x18] sm:$0xff]
  %v994 = vmul.f32 %v959, %v990
  %v995 = vmul.f32 %v969, %v991
  %v996 = vmul.f32 %v979, %v992
  %v997 = vmul.f32 %v989, %v993
  %999 = vset.pattern.permute.xlu0 0
  %1000 = vperm.xlu0 %999, %v994
  %v1001 = vpop.permute.xlu0 %1000
  %1004 = vset.pattern.permute.xlu0 0
  %1005 = vperm.xlu0 %1004, %v995
  %v1006 = vpop.permute.xlu0 %1005
  %1009 = vset.pattern.permute.xlu0 0
  %1010 = vperm.xlu0 %1009, %v996
  %v1011 = vpop.permute.xlu0 %1010
  %1014 = vset.pattern.permute.xlu0 0
  %1015 = vperm.xlu0 %1014, %v997
  %v1016 = vpop.permute.xlu0 %1015
  %v1018 = vmul.f32 %v890, %v1001
  %v1019 = vmul.f32 %v891, %v1001
  %v1020 = vmul.f32 %v892, %v1001
  %v1021 = vmul.f32 %v893, %v1001
  %v1022 = vmul.f32 %v894, %v1006
  %v1023 = vmul.f32 %v895, %v1006
  %v1024 = vmul.f32 %v896, %v1006
  %v1025 = vmul.f32 %v897, %v1006
  %v1026 = vmul.f32 %v898, %v1011
  %v1027 = vmul.f32 %v899, %v1011
  %v1028 = vmul.f32 %v900, %v1011
  %v1029 = vmul.f32 %v901, %v1011
  %v1030 = vmul.f32 %v902, %v1016
  %v1031 = vmul.f32 %v903, %v1016
  %v1032 = vmul.f32 %v904, %v1016
  %v1033 = vmul.f32 %v905, %v1016
  %v1034 = vld [vmem:[%s8] sm:$0xff]
  %v1035 = vld [vmem:[%s8 + $0x8] sm:$0xff]
  %v1036 = vld [vmem:[%s8 + $0x10] sm:$0xff]
  %v1037 = vld [vmem:[%s8 + $0x18] sm:$0xff]
  %1039 = vset.pattern.permute.xlu0 0
  %1040 = vperm.xlu0 %1039, %v1034
  %v1041 = vpop.permute.xlu0 %1040
  %1044 = vset.pattern.permute.xlu0 0
  %1045 = vperm.xlu0 %1044, %v1035
  %v1046 = vpop.permute.xlu0 %1045
  %1049 = vset.pattern.permute.xlu0 0
  %1050 = vperm.xlu0 %1049, %v1036
  %v1051 = vpop.permute.xlu0 %1050
  %1054 = vset.pattern.permute.xlu0 0
  %1055 = vperm.xlu0 %1054, %v1037
  %v1056 = vpop.permute.xlu0 %1055
  %v1058 = vadd.f32 %v1018, %v1041
  %v1059 = vadd.f32 %v1019, %v1041
  %v1060 = vadd.f32 %v1020, %v1041
  %v1061 = vadd.f32 %v1021, %v1041
  %v1062 = vadd.f32 %v1022, %v1046
  %v1063 = vadd.f32 %v1023, %v1046
  %v1064 = vadd.f32 %v1024, %v1046
  %v1065 = vadd.f32 %v1025, %v1046
  %v1066 = vadd.f32 %v1026, %v1051
  %v1067 = vadd.f32 %v1027, %v1051
  %v1068 = vadd.f32 %v1028, %v1051
  %v1069 = vadd.f32 %v1029, %v1051
  %v1070 = vadd.f32 %v1030, %v1056
  %v1071 = vadd.f32 %v1031, %v1056
  %v1072 = vadd.f32 %v1032, %v1056
  %v1073 = vadd.f32 %v1033, %v1056
  %vm1074 = vcmp.ge.f32.partialorder %v1058, 0.0
  %vm1075 = vcmp.ge.f32.partialorder %v1059, 0.0
  %vm1076 = vcmp.ge.f32.partialorder %v1060, 0.0
  %vm1077 = vcmp.ge.f32.partialorder %v1061, 0.0
  %vm1078 = vcmp.ge.f32.partialorder %v1062, 0.0
  %vm1079 = vcmp.ge.f32.partialorder %v1063, 0.0
  %vm1080 = vcmp.ge.f32.partialorder %v1064, 0.0
  %vm1081 = vcmp.ge.f32.partialorder %v1065, 0.0
  %vm1082 = vcmp.ge.f32.partialorder %v1066, 0.0
  %vm1083 = vcmp.ge.f32.partialorder %v1067, 0.0
  %vm1084 = vcmp.ge.f32.partialorder %v1068, 0.0
  %vm1085 = vcmp.ge.f32.partialorder %v1069, 0.0
  %vm1086 = vcmp.ge.f32.partialorder %v1070, 0.0
  %vm1087 = vcmp.ge.f32.partialorder %v1071, 0.0
  %vm1088 = vcmp.ge.f32.partialorder %v1072, 0.0
  %vm1089 = vcmp.ge.f32.partialorder %v1073, 0.0
  %v1090 = vmul.f32 %v1058, 0.2
  %v1091 = vmul.f32 %v1059, 0.2
  %v1092 = vmul.f32 %v1060, 0.2
  %v1093 = vmul.f32 %v1061, 0.2
  %v1094 = vmul.f32 %v1062, 0.2
  %v1095 = vmul.f32 %v1063, 0.2
  %v1096 = vmul.f32 %v1064, 0.2
  %v1097 = vmul.f32 %v1065, 0.2
  %v1098 = vmul.f32 %v1066, 0.2
  %v1099 = vmul.f32 %v1067, 0.2
  %v1100 = vmul.f32 %v1068, 0.2
  %v1101 = vmul.f32 %v1069, 0.2
  %v1102 = vmul.f32 %v1070, 0.2
  %v1103 = vmul.f32 %v1071, 0.2
  %v1104 = vmul.f32 %v1072, 0.2
  %v1105 = vmul.f32 %v1073, 0.2
  %v1106 = vsel %vm1074, %v1058, %v1090
  %v1107 = vsel %vm1075, %v1059, %v1091
  %v1108 = vsel %vm1076, %v1060, %v1092
  %v1109 = vsel %vm1077, %v1061, %v1093
  %v1110 = vsel %vm1078, %v1062, %v1094
  %v1111 = vsel %vm1079, %v1063, %v1095
  %v1112 = vsel %vm1080, %v1064, %v1096
  %v1113 = vsel %vm1081, %v1065, %v1097
  %v1114 = vsel %vm1082, %v1066, %v1098
  %v1115 = vsel %vm1083, %v1067, %v1099
  %v1116 = vsel %vm1084, %v1068, %v1100
  %v1117 = vsel %vm1085, %v1069, %v1101
  %v1118 = vsel %vm1086, %v1070, %v1102
  %v1119 = vsel %vm1087, %v1071, %v1103
  %v1120 = vsel %vm1088, %v1072, %v1104
  %v1121 = vsel %vm1089, %v1073, %v1105
  %v1122 = vpack.c.bf16 %v1110, %v1106
  %v1123 = vpack.c.bf16 %v1111, %v1107
  %v1124 = vpack.c.bf16 %v1112, %v1108
  %v1125 = vpack.c.bf16 %v1113, %v1109
  %v1126 = vpack.c.bf16 %v1118, %v1114
  %v1127 = vpack.c.bf16 %v1119, %v1115
  %v1128 = vpack.c.bf16 %v1120, %v1116
  %v1129 = vpack.c.bf16 %v1121, %v1117
  %v1130 = vld [vmem:[%s9] sm:$0xf]
  %v1131 = vld [vmem:[%s9 + $0x4] sm:$0xf]
  %v1132 = vld [vmem:[%s9 + $0x8] sm:$0xf]
  %v1133 = vld [vmem:[%s9 + $0xc] sm:$0xf]
  %v1138 = vunpack.c.l.b16 %v1130
  %v1139 = vunpack.c.l.b16 %v1131
  %v1140 = vunpack.c.l.b16 %v1132
  %v1141 = vunpack.c.l.b16 %v1133
  %v1142 = vpack.c.b16 %v1139, %v1138
  %v1143 = vpack.c.b16 %v1141, %v1140
  %v1145 = vsel %vm423, %v1142, 0
  %v1148 = vsel %vm423, %v1143, 0
  %1150 = vmatpush.bf16.msra.mxu0 0
  %1151 = vmatpush.bf16.msra.mxu0 0
  %1152 = vmatpush.bf16.msra.mxu0 0
  %1153 = vmatpush.bf16.msra.mxu0 0
  %1154 = vmatpush.bf16.msra.mxu0 0
  %1155 = vmatpush.bf16.msra.mxu0 0
  %1156 = vmatpush.bf16.msra.mxu0 %v1126
  %1157 = vmatpush.bf16.msra.mxu0 %v1122
  %1158 = vmatmul.bf16.gmra.mxu0 %v1145
  %v1159 = vpop.f32.mrf.mxu0
  %v1160 = vadd.f32 0.0, %v1159
  %v1161 = vpop.f32.mrf.mxu0
  %v1162 = vadd.f32 0.0, %v1161
  %1163 = vmatmul.bf16.gmra.mxu0 %v1148
  %v1164 = vpop.f32.mrf.mxu0
  %v1165 = vadd.f32 0.0, %v1164
  %v1166 = vpop.f32.mrf.mxu0
  %v1167 = vadd.f32 0.0, %v1166
  %1168 = vdwg.mxu0
  %1169 = vmatpush.bf16.msra.mxu0 0
  %1170 = vmatpush.bf16.msra.mxu0 0
  %1171 = vmatpush.bf16.msra.mxu0 0
  %1172 = vmatpush.bf16.msra.mxu0 0
  %1173 = vmatpush.bf16.msra.mxu0 0
  %1174 = vmatpush.bf16.msra.mxu0 0
  %1175 = vmatpush.bf16.msra.mxu0 %v1127
  %1176 = vmatpush.bf16.msra.mxu0 %v1123
  %1177 = vmatmul.bf16.gmra.mxu0 %v1145
  %v1178 = vpop.f32.mrf.mxu0
  %v1179 = vadd.f32 0.0, %v1178
  %v1180 = vpop.f32.mrf.mxu0
  %v1181 = vadd.f32 0.0, %v1180
  %1182 = vmatmul.bf16.gmra.mxu0 %v1148
  %v1183 = vpop.f32.mrf.mxu0
  %v1184 = vadd.f32 0.0, %v1183
  %v1185 = vpop.f32.mrf.mxu0
  %v1186 = vadd.f32 0.0, %v1185
  %1187 = vdwg.mxu0
  %1188 = vmatpush.bf16.msra.mxu0 0
  %1189 = vmatpush.bf16.msra.mxu0 0
  %1190 = vmatpush.bf16.msra.mxu0 0
  %1191 = vmatpush.bf16.msra.mxu0 0
  %1192 = vmatpush.bf16.msra.mxu0 0
  %1193 = vmatpush.bf16.msra.mxu0 0
  %1194 = vmatpush.bf16.msra.mxu0 %v1128
  %1195 = vmatpush.bf16.msra.mxu0 %v1124
  %1196 = vmatmul.bf16.gmra.mxu0 %v1145
  %v1197 = vpop.f32.mrf.mxu0
  %v1198 = vadd.f32 0.0, %v1197
  %v1199 = vpop.f32.mrf.mxu0
  %v1200 = vadd.f32 0.0, %v1199
  %1201 = vmatmul.bf16.gmra.mxu0 %v1148
  %v1202 = vpop.f32.mrf.mxu0
  %v1203 = vadd.f32 0.0, %v1202
  %v1204 = vpop.f32.mrf.mxu0
  %v1205 = vadd.f32 0.0, %v1204
  %1206 = vdwg.mxu0
  %1207 = vmatpush.bf16.msra.mxu0 0
  %1208 = vmatpush.bf16.msra.mxu0 0
  %1209 = vmatpush.bf16.msra.mxu0 0
  %1210 = vmatpush.bf16.msra.mxu0 0
  %1211 = vmatpush.bf16.msra.mxu0 0
  %1212 = vmatpush.bf16.msra.mxu0 0
  %1213 = vmatpush.bf16.msra.mxu0 %v1129
  %1214 = vmatpush.bf16.msra.mxu0 %v1125
  %1215 = vmatmul.bf16.gmra.mxu0 %v1145
  %v1216 = vpop.f32.mrf.mxu0
  %v1217 = vadd.f32 0.0, %v1216
  %v1218 = vpop.f32.mrf.mxu0
  %v1219 = vadd.f32 0.0, %v1218
  %1220 = vmatmul.bf16.gmra.mxu0 %v1148
  %v1221 = vpop.f32.mrf.mxu0
  %v1222 = vadd.f32 0.0, %v1221
  %v1223 = vpop.f32.mrf.mxu0
  %v1224 = vadd.f32 0.0, %v1223
  %1225 = vdwg.mxu0
  %v1226 = vadd.f32 %v1160, %v1179
  %v1227 = vadd.f32 %v1226, %v1198
  %v1228 = vadd.f32 %v1227, %v1217
  %1229 = vadd.xlane.f32.xlu0 %v1228
  %v1230 = vpop.xlane.xlu0 %1229
  %v1231 = vadd.f32 %v1162, %v1181
  %v1232 = vadd.f32 %v1231, %v1200
  %v1233 = vadd.f32 %v1232, %v1219
  %1234 = vadd.xlane.f32.xlu0 %v1233
  %v1235 = vpop.xlane.xlu0 %1234
  %v1236 = vadd.f32 %v1165, %v1184
  %v1237 = vadd.f32 %v1236, %v1203
  %v1238 = vadd.f32 %v1237, %v1222
  %1239 = vadd.xlane.f32.xlu0 %v1238
  %v1240 = vpop.xlane.xlu0 %1239
  %v1241 = vadd.f32 %v1167, %v1186
  %v1242 = vadd.f32 %v1241, %v1205
  %v1243 = vadd.f32 %v1242, %v1224
  %1244 = vadd.xlane.f32.xlu0 %v1243
  %v1245 = vpop.xlane.xlu0 %1244
  %v1246 = vmul.f32 %v1230, 0.001953125
  %v1247 = vmul.f32 %v1235, 0.001953125
  %v1248 = vmul.f32 %v1240, 0.001953125
  %v1249 = vmul.f32 %v1245, 0.001953125
  %v1250 = vsub.f32 %v1160, %v1246
  %v1251 = vsub.f32 %v1179, %v1246
  %v1252 = vsub.f32 %v1198, %v1246
  %v1253 = vsub.f32 %v1217, %v1246
  %v1254 = vsub.f32 %v1162, %v1247
  %v1255 = vsub.f32 %v1181, %v1247
  %v1256 = vsub.f32 %v1200, %v1247
  %v1257 = vsub.f32 %v1219, %v1247
  %v1258 = vsub.f32 %v1165, %v1248
  %v1259 = vsub.f32 %v1184, %v1248
  %v1260 = vsub.f32 %v1203, %v1248
  %v1261 = vsub.f32 %v1222, %v1248
  %v1262 = vsub.f32 %v1167, %v1249
  %v1263 = vsub.f32 %v1186, %v1249
  %v1264 = vsub.f32 %v1205, %v1249
  %v1265 = vsub.f32 %v1224, %v1249
  %v1266 = vmul.f32 %v1250, %v1250
  %v1267 = vmul.f32 %v1251, %v1251
  %v1268 = vmul.f32 %v1252, %v1252
  %v1269 = vmul.f32 %v1253, %v1253
  %v1270 = vmul.f32 %v1254, %v1254
  %v1271 = vmul.f32 %v1255, %v1255
  %v1272 = vmul.f32 %v1256, %v1256
  %v1273 = vmul.f32 %v1257, %v1257
  %v1274 = vmul.f32 %v1258, %v1258
  %v1275 = vmul.f32 %v1259, %v1259
  %v1276 = vmul.f32 %v1260, %v1260
  %v1277 = vmul.f32 %v1261, %v1261
  %v1278 = vmul.f32 %v1262, %v1262
  %v1279 = vmul.f32 %v1263, %v1263
  %v1280 = vmul.f32 %v1264, %v1264
  %v1281 = vmul.f32 %v1265, %v1265
  %v1282 = vadd.f32 %v1266, %v1267
  %v1283 = vadd.f32 %v1282, %v1268
  %v1284 = vadd.f32 %v1283, %v1269
  %1285 = vadd.xlane.f32.xlu0 %v1284
  %v1286 = vpop.xlane.xlu0 %1285
  %v1287 = vadd.f32 %v1270, %v1271
  %v1288 = vadd.f32 %v1287, %v1272
  %v1289 = vadd.f32 %v1288, %v1273
  %1290 = vadd.xlane.f32.xlu0 %v1289
  %v1291 = vpop.xlane.xlu0 %1290
  %v1292 = vadd.f32 %v1274, %v1275
  %v1293 = vadd.f32 %v1292, %v1276
  %v1294 = vadd.f32 %v1293, %v1277
  %1295 = vadd.xlane.f32.xlu0 %v1294
  %v1296 = vpop.xlane.xlu0 %1295
  %v1297 = vadd.f32 %v1278, %v1279
  %v1298 = vadd.f32 %v1297, %v1280
  %v1299 = vadd.f32 %v1298, %v1281
  %1300 = vadd.xlane.f32.xlu0 %v1299
  %v1301 = vpop.xlane.xlu0 %1300
  %v1302 = vmul.f32 %v1286, 0.001953125
  %v1303 = vmul.f32 %v1291, 0.001953125
  %v1304 = vmul.f32 %v1296, 0.001953125
  %v1305 = vmul.f32 %v1301, 0.001953125
  %v1306 = vadd.f32 %v1302, 1e-05
  %v1307 = vadd.f32 %v1303, 1e-05
  %v1308 = vadd.f32 %v1304, 1e-05
  %v1309 = vadd.f32 %v1305, 1e-05
  %v1310 = vrsqrt.pop %v1306
  %v1311 = vmul.f32 %v1310, %v1306
  %v1312 = vmul.f32 %v1311, %v1310
  %v1313 = vmul.f32 0.5, %v1312
  %v1314 = vsub.f32 1.5, %v1313
  %v1315 = vmul.f32 %v1310, %v1314
  %vm1316 = vweird.f32 %v1306
  %vm1317 = vweird.f32 %v1310
  %vm1318 = vmor %vm1316, %vm1317
  %v1319 = vsel %vm1318, %v1310, %v1315
  %v1320 = vrsqrt.pop %v1307
  %v1321 = vmul.f32 %v1320, %v1307
  %v1322 = vmul.f32 %v1321, %v1320
  %v1323 = vmul.f32 0.5, %v1322
  %v1324 = vsub.f32 1.5, %v1323
  %v1325 = vmul.f32 %v1320, %v1324
  %vm1326 = vweird.f32 %v1307
  %vm1327 = vweird.f32 %v1320
  %vm1328 = vmor %vm1326, %vm1327
  %v1329 = vsel %vm1328, %v1320, %v1325
  %v1330 = vrsqrt.pop %v1308
  %v1331 = vmul.f32 %v1330, %v1308
  %v1332 = vmul.f32 %v1331, %v1330
  %v1333 = vmul.f32 0.5, %v1332
  %v1334 = vsub.f32 1.5, %v1333
  %v1335 = vmul.f32 %v1330, %v1334
  %vm1336 = vweird.f32 %v1308
  %vm1337 = vweird.f32 %v1330
  %vm1338 = vmor %vm1336, %vm1337
  %v1339 = vsel %vm1338, %v1330, %v1335
  %v1340 = vrsqrt.pop %v1309
  %v1341 = vmul.f32 %v1340, %v1309
  %v1342 = vmul.f32 %v1341, %v1340
  %v1343 = vmul.f32 0.5, %v1342
  %v1344 = vsub.f32 1.5, %v1343
  %v1345 = vmul.f32 %v1340, %v1344
  %vm1346 = vweird.f32 %v1309
  %vm1347 = vweird.f32 %v1340
  %vm1348 = vmor %vm1346, %vm1347
  %v1349 = vsel %vm1348, %v1340, %v1345
  %v1350 = vld [vmem:[%s10] sm:$0xff]
  %v1351 = vld [vmem:[%s10 + $0x8] sm:$0xff]
  %v1352 = vld [vmem:[%s10 + $0x10] sm:$0xff]
  %v1353 = vld [vmem:[%s10 + $0x18] sm:$0xff]
  %v1354 = vmul.f32 %v1319, %v1350
  %v1355 = vmul.f32 %v1329, %v1351
  %v1356 = vmul.f32 %v1339, %v1352
  %v1357 = vmul.f32 %v1349, %v1353
  %1359 = vset.pattern.permute.xlu0 0
  %1360 = vperm.xlu0 %1359, %v1354
  %v1361 = vpop.permute.xlu0 %1360
  %1364 = vset.pattern.permute.xlu0 0
  %1365 = vperm.xlu0 %1364, %v1355
  %v1366 = vpop.permute.xlu0 %1365
  %1369 = vset.pattern.permute.xlu0 0
  %1370 = vperm.xlu0 %1369, %v1356
  %v1371 = vpop.permute.xlu0 %1370
  %1374 = vset.pattern.permute.xlu0 0
  %1375 = vperm.xlu0 %1374, %v1357
  %v1376 = vpop.permute.xlu0 %1375
  %v1378 = vmul.f32 %v1250, %v1361
  %v1379 = vmul.f32 %v1251, %v1361
  %v1380 = vmul.f32 %v1252, %v1361
  %v1381 = vmul.f32 %v1253, %v1361
  %v1382 = vmul.f32 %v1254, %v1366
  %v1383 = vmul.f32 %v1255, %v1366
  %v1384 = vmul.f32 %v1256, %v1366
  %v1385 = vmul.f32 %v1257, %v1366
  %v1386 = vmul.f32 %v1258, %v1371
  %v1387 = vmul.f32 %v1259, %v1371
  %v1388 = vmul.f32 %v1260, %v1371
  %v1389 = vmul.f32 %v1261, %v1371
  %v1390 = vmul.f32 %v1262, %v1376
  %v1391 = vmul.f32 %v1263, %v1376
  %v1392 = vmul.f32 %v1264, %v1376
  %v1393 = vmul.f32 %v1265, %v1376
  %v1394 = vld [vmem:[%s11] sm:$0xff]
  %v1395 = vld [vmem:[%s11 + $0x8] sm:$0xff]
  %v1396 = vld [vmem:[%s11 + $0x10] sm:$0xff]
  %v1397 = vld [vmem:[%s11 + $0x18] sm:$0xff]
  %1399 = vset.pattern.permute.xlu0 0
  %1400 = vperm.xlu0 %1399, %v1394
  %v1401 = vpop.permute.xlu0 %1400
  %1404 = vset.pattern.permute.xlu0 0
  %1405 = vperm.xlu0 %1404, %v1395
  %v1406 = vpop.permute.xlu0 %1405
  %1409 = vset.pattern.permute.xlu0 0
  %1410 = vperm.xlu0 %1409, %v1396
  %v1411 = vpop.permute.xlu0 %1410
  %1414 = vset.pattern.permute.xlu0 0
  %1415 = vperm.xlu0 %1414, %v1397
  %v1416 = vpop.permute.xlu0 %1415
  %v1418 = vadd.f32 %v1378, %v1401
  %v1419 = vadd.f32 %v1379, %v1401
  %v1420 = vadd.f32 %v1380, %v1401
  %v1421 = vadd.f32 %v1381, %v1401
  %v1422 = vadd.f32 %v1382, %v1406
  %v1423 = vadd.f32 %v1383, %v1406
  %v1424 = vadd.f32 %v1384, %v1406
  %v1425 = vadd.f32 %v1385, %v1406
  %v1426 = vadd.f32 %v1386, %v1411
  %v1427 = vadd.f32 %v1387, %v1411
  %v1428 = vadd.f32 %v1388, %v1411
  %v1429 = vadd.f32 %v1389, %v1411
  %v1430 = vadd.f32 %v1390, %v1416
  %v1431 = vadd.f32 %v1391, %v1416
  %v1432 = vadd.f32 %v1392, %v1416
  %v1433 = vadd.f32 %v1393, %v1416
  %vm1434 = vcmp.ge.f32.partialorder %v1418, 0.0
  %vm1435 = vcmp.ge.f32.partialorder %v1419, 0.0
  %vm1436 = vcmp.ge.f32.partialorder %v1420, 0.0
  %vm1437 = vcmp.ge.f32.partialorder %v1421, 0.0
  %vm1438 = vcmp.ge.f32.partialorder %v1422, 0.0
  %vm1439 = vcmp.ge.f32.partialorder %v1423, 0.0
  %vm1440 = vcmp.ge.f32.partialorder %v1424, 0.0
  %vm1441 = vcmp.ge.f32.partialorder %v1425, 0.0
  %vm1442 = vcmp.ge.f32.partialorder %v1426, 0.0
  %vm1443 = vcmp.ge.f32.partialorder %v1427, 0.0
  %vm1444 = vcmp.ge.f32.partialorder %v1428, 0.0
  %vm1445 = vcmp.ge.f32.partialorder %v1429, 0.0
  %vm1446 = vcmp.ge.f32.partialorder %v1430, 0.0
  %vm1447 = vcmp.ge.f32.partialorder %v1431, 0.0
  %vm1448 = vcmp.ge.f32.partialorder %v1432, 0.0
  %vm1449 = vcmp.ge.f32.partialorder %v1433, 0.0
  %v1450 = vmul.f32 %v1418, 0.2
  %v1451 = vmul.f32 %v1419, 0.2
  %v1452 = vmul.f32 %v1420, 0.2
  %v1453 = vmul.f32 %v1421, 0.2
  %v1454 = vmul.f32 %v1422, 0.2
  %v1455 = vmul.f32 %v1423, 0.2
  %v1456 = vmul.f32 %v1424, 0.2
  %v1457 = vmul.f32 %v1425, 0.2
  %v1458 = vmul.f32 %v1426, 0.2
  %v1459 = vmul.f32 %v1427, 0.2
  %v1460 = vmul.f32 %v1428, 0.2
  %v1461 = vmul.f32 %v1429, 0.2
  %v1462 = vmul.f32 %v1430, 0.2
  %v1463 = vmul.f32 %v1431, 0.2
  %v1464 = vmul.f32 %v1432, 0.2
  %v1465 = vmul.f32 %v1433, 0.2
  %v1466 = vsel %vm1434, %v1418, %v1450
  %v1467 = vsel %vm1435, %v1419, %v1451
  %v1468 = vsel %vm1436, %v1420, %v1452
  %v1469 = vsel %vm1437, %v1421, %v1453
  %v1470 = vsel %vm1438, %v1422, %v1454
  %v1471 = vsel %vm1439, %v1423, %v1455
  %v1472 = vsel %vm1440, %v1424, %v1456
  %v1473 = vsel %vm1441, %v1425, %v1457
  %v1474 = vsel %vm1442, %v1426, %v1458
  %v1475 = vsel %vm1443, %v1427, %v1459
  %v1476 = vsel %vm1444, %v1428, %v1460
  %v1477 = vsel %vm1445, %v1429, %v1461
  %v1478 = vsel %vm1446, %v1430, %v1462
  %v1479 = vsel %vm1447, %v1431, %v1463
  %v1480 = vsel %vm1448, %v1432, %v1464
  %v1481 = vsel %vm1449, %v1433, %v1465
  %v1482 = vld [vmem:[%s12] sm:$0xff]
  %v1483 = vld [vmem:[%s12 + $0x8] sm:$0xff]
  %v1484 = vld [vmem:[%s12 + $0x10] sm:$0xff]
  %v1485 = vld [vmem:[%s12 + $0x18] sm:$0xff]
  %1487 = vset.pattern.permute.xlu0 0
  %1488 = vperm.xlu0 %1487, %v1482
  %v1489 = vpop.permute.xlu0 %1488
  %1492 = vset.pattern.permute.xlu0 0
  %1493 = vperm.xlu0 %1492, %v1483
  %v1494 = vpop.permute.xlu0 %1493
  %1497 = vset.pattern.permute.xlu0 0
  %1498 = vperm.xlu0 %1497, %v1484
  %v1499 = vpop.permute.xlu0 %1498
  %1502 = vset.pattern.permute.xlu0 0
  %1503 = vperm.xlu0 %1502, %v1485
  %v1504 = vpop.permute.xlu0 %1503
  %v1506 = vmul.f32 %v1466, %v1489
  %v1507 = vmul.f32 %v1467, %v1489
  %v1508 = vmul.f32 %v1468, %v1489
  %v1509 = vmul.f32 %v1469, %v1489
  %v1510 = vmul.f32 %v1470, %v1494
  %v1511 = vmul.f32 %v1471, %v1494
  %v1512 = vmul.f32 %v1472, %v1494
  %v1513 = vmul.f32 %v1473, %v1494
  %v1514 = vmul.f32 %v1474, %v1499
  %v1515 = vmul.f32 %v1475, %v1499
  %v1516 = vmul.f32 %v1476, %v1499
  %v1517 = vmul.f32 %v1477, %v1499
  %v1518 = vmul.f32 %v1478, %v1504
  %v1519 = vmul.f32 %v1479, %v1504
  %v1520 = vmul.f32 %v1480, %v1504
  %v1521 = vmul.f32 %v1481, %v1504
  %v1522 = vadd.f32 %v1506, %v1510
  %v1523 = vadd.f32 %v1522, %v1514
  %v1524 = vadd.f32 %v1523, %v1518
  %v1525 = vrot.slane %v1524, 4
  %v1526 = vadd.f32 %v1524, %v1525
  %v1527 = vrot.slane %v1526, 2
  %v1528 = vadd.f32 %v1526, %v1527
  %v1529 = vrot.slane %v1528, 1
  %v1530 = vadd.f32 %v1528, %v1529
  %v1531 = vadd.f32 %v1507, %v1511
  %v1532 = vadd.f32 %v1531, %v1515
  %v1533 = vadd.f32 %v1532, %v1519
  %v1534 = vrot.slane %v1533, 4
  %v1535 = vadd.f32 %v1533, %v1534
  %v1536 = vrot.slane %v1535, 2
  %v1537 = vadd.f32 %v1535, %v1536
  %v1538 = vrot.slane %v1537, 1
  %v1539 = vadd.f32 %v1537, %v1538
  %v1540 = vadd.f32 %v1508, %v1512
  %v1541 = vadd.f32 %v1540, %v1516
  %v1542 = vadd.f32 %v1541, %v1520
  %v1543 = vrot.slane %v1542, 4
  %v1544 = vadd.f32 %v1542, %v1543
  %v1545 = vrot.slane %v1544, 2
  %v1546 = vadd.f32 %v1544, %v1545
  %v1547 = vrot.slane %v1546, 1
  %v1548 = vadd.f32 %v1546, %v1547
  %v1549 = vadd.f32 %v1509, %v1513
  %v1550 = vadd.f32 %v1549, %v1517
  %v1551 = vadd.f32 %v1550, %v1521
  %v1552 = vrot.slane %v1551, 4
  %v1553 = vadd.f32 %v1551, %v1552
  %v1554 = vrot.slane %v1553, 2
  %v1555 = vadd.f32 %v1553, %v1554
  %v1556 = vrot.slane %v1555, 1
  %v1557 = vadd.f32 %v1555, %v1556
  %v1560 = vrot.slane %v1539, 7
  %vm1561 = vcmask 1040384
  %v1562 = vsel %vm1561, %v1530, %v1560
  %v1564 = vlaneseq
  %vm1565 = vcmp.ge.s32.totalorder %v1564, 0
  %vm1566 = vcmp.lt.s32.totalorder %v1564, 256
  %vm1567 = vmand %vm1565, %vm1566
  %1568 = vst.msk [vmem:[#allocation2] ss:$2 sm:$0x3] %vm1567, %v1562
  %v1571 = vrot.slane %v1557, 7
  %v1572 = vsel %vm1561, %v1548, %v1571
  %s1574 = scalar_lea.vmem [#allocation2], 1
  %1575 = vst.msk [vmem:[%s1574] ss:$2 sm:$0x3] %vm1567, %v1572
  %v1576 = vld [vmem:[#allocation2] sm:$0xf]
  %1578 = vst [vmem:[#allocation1] ss:$4 sm:$0xff] %v1576
  %v1579 = vld.sshfl [vmem:[#allocation1] sm:$0xff pattern:$0x73625140]
  %v1580 = vld.sshfl [vmem:[#allocation1 + $0x8] sm:$0xff pattern:$0x73625140]
  %vm1583 = vcmask 1041408
  %v1584 = vsel %vm1583, %v1579, 0.0
  %v1585 = vsel %vm1583, %v1580, 0.0
  %v1586 = vadd.f32 %v1584, %v1585
  %1587 = vadd.xlane.f32.xlu0 %v1586
  %v1588 = vpop.xlane.xlu0 %1587
  %v1589 = vxor.u32 %v1588, 2147483648
  %v1590 = vmul.f32 %v1589, 1.442695
  %v1591 = vpow.pop %v1590
  %v1592 = vadd.f32 %v1591, 1.0
  %v1593 = vrcp.pop %v1592
  %v1594 = vmul.f32 %v1592, %v1593
  %v1595 = vsub.f32 1.0, %v1594
  %v1596 = vmul.f32 %v1593, %v1595
  %v1597 = vadd.f32 %v1593, %v1596
  %vm1598 = vweird.f32 %v1592
  %vm1599 = vweird.f32 %v1593
  %vm1600 = vmor %vm1598, %vm1599
  %v1601 = vsel %vm1600, %v1593, %v1597
  %v1602 = vand.u32 2147483647, %v1592
  %vm1603 = vcmp.eq.f32.partialorder %v1602, 8.507059e+37
  %v1604 = vand.u32 %v1592, 2147483648
  %v1605 = vor.u32 1.1754944e-38, %v1604
  %v1606 = vsel %vm1603, %v1605, %v1601
  %v1607 = vmul.f32 1.0, %v1606
  %vm1608 = vcmask 1024
  %1609 = vst.msk [vmem:[%s13] sm:$0x3] %vm1608, %v1607
  // Predicated region
  $region54: #{discriminator_forward.1} parent=0 // pred_check
    _
  $region55: #{discriminator_forward.1} parent=0 // pred_check_branch
    %1611 = sbr.rel (0) target = $region57
  $region56: #{discriminator_forward.1} parent=0 // pred_region
    _
  $region57: #{discriminator_forward.1} parent=0 // pred_fallthru
    _
  // Predicated region
  $region58: #{discriminator_forward.1} parent=0 // pred_check
    _
  $region59: #{discriminator_forward.1} parent=0 // pred_check_branch
    %1613 = sbr.rel (0) target = $region61
  $region60: #{discriminator_forward.1} parent=0 // pred_region
    _
  $region61: #{discriminator_forward.1} parent=0 // pred_fallthru
    _

</llo_original>
